<compile_context>
chip_gen: v7x
topology: tpu7x:2x2x1
jax: 0.10.0
libtpu: 0.0.40
codegen_flags: <defaults>
</compile_context>

<pallas_src>
import functools

import jax
import jax.numpy as jnp
from jax.experimental import pallas as pl
from jax.experimental.pallas import tpu as pltpu


# -----------------------------------------------------------------------------
# Fused kernel: layer-outer / time-inner LSTM + lane-dense MLP head epilogue.
# -----------------------------------------------------------------------------
def _make_fused_kernel(num_layers, hidden_size, seq_len, batch_pad):
    L, H, S, B = num_layers, hidden_size, seq_len, batch_pad

    def kernel(*refs):
        x_ref = refs[0]                            # (S*B, 9) time-major, padded batch
        w_refs = refs[1:1 + 3 * L]                 # per layer: W_ih, W_hh, bias
        m_refs = refs[1 + 3 * L:1 + 3 * L + 8]     # w1,b1,w2,b2,w3,b3,w4,b4 (padded)
        out_ref = refs[1 + 3 * L + 8]              # (L*B, 128)
        proj_buf = refs[-2]                        # VMEM (S*B, 4H) f32 scratch
        h_buf = refs[-1]                           # VMEM (S*B, H)  f32 scratch

        # Per-lane affine constants recovering [sig|sig|sig|tanh] from a single
        # full-vreg tanh (0.5 pre-scale on i/f/o columns folded in at init):
        #   sigmoid(z) = 0.5 * tanh(z/2) + 0.5
        lane = jax.lax.broadcasted_iota(jnp.int32, (B, 4 * H), 1)
        is_ifo = lane < 3 * H
        g_scale = jnp.where(is_ifo, 0.5, 1.0).astype(jnp.float32)
        g_shift = jnp.where(is_ifo, 0.5, 0.0).astype(jnp.float32)

        final_h = []
        for l in range(L):
            w_ih = w_refs[3 * l][...]              # bf16 (in_l, 4H)
            w_hh = w_refs[3 * l + 1][...]          # bf16 (H, 4H)
            bias = w_refs[3 * l + 2][...]          # f32  (1, 4H)

            # Hoisted, batched input projection over all S timesteps — one MXU
            # matmul per layer instead of S tiny ones on the serial path.
            if l == 0:
                inp_all = x_ref[...].astype(jnp.bfloat16)       # (S*B, 9)
            else:
                inp_all = h_buf[...].astype(jnp.bfloat16)       # (S*B, H)
            proj_buf[...] = (
                jnp.dot(inp_all, w_ih, preferred_element_type=jnp.float32)
                + bias)                                          # bias added once

            h = jnp.zeros((B, H), jnp.float32)
            c = jnp.zeros((B, H), jnp.float32)
            # Serial recurrence: only h @ W_hh left inside the loop (S is a
            # small compile-time constant -> static unroll, static slices).
            for t in range(S):
                pre = proj_buf[t * B:(t + 1) * B, :]             # (B, 4H) f32
                gates = pre + jnp.dot(h.astype(jnp.bfloat16), w_hh,
                                      preferred_element_type=jnp.float32)
                post = jnp.tanh(gates) * g_scale + g_shift       # one EUP push
                i_g = post[:, 0 * H:1 * H]
                f_g = post[:, 1 * H:2 * H]
                o_g = post[:, 2 * H:3 * H]
                g_g = post[:, 3 * H:4 * H]
                c = f_g * c + i_g * g_g
                h = o_g * jnp.tanh(c)
                if l < L - 1:
                    h_buf[t * B:(t + 1) * B, :] = h              # next layer's input
            final_h.append(h)

        # ---- MLP head epilogue on final hidden states (L*B, H), lane-dense ----
        hid = jnp.concatenate(final_h, axis=0)                   # (L*B, H) f32
        w1, b1, w2, b2, w3, b3, w4, b4 = [r[...] for r in m_refs]
        z = jnp.maximum(
            jnp.dot(hid.astype(jnp.bfloat16), w1,
                    preferred_element_type=jnp.float32) + b1, 0.0)
        z = jnp.maximum(
            jnp.dot(z.astype(jnp.bfloat16), w2,
                    preferred_element_type=jnp.float32) + b2, 0.0)
        z = jnp.maximum(
            jnp.dot(z.astype(jnp.bfloat16), w3,
                    preferred_element_type=jnp.float32) + b3, 0.0)
        out_ref[...] = jnp.dot(z.astype(jnp.bfloat16), w4,
                               preferred_element_type=jnp.float32) + b4

    return kernel


# -----------------------------------------------------------------------------
# Full model forward (matches RNNModel.forward: head applied to final `hidden`)
# -----------------------------------------------------------------------------
def rnn_model_forward(x, lstm_params, mlp_params, hidden_size):
    """x: (B, S, 9) batch_first.
    lstm_params: list of (W_ih (in_l,4H), W_hh (H,4H), bias (1,4H)) f32,
                 gate columns ordered [i|f|o|g].
    mlp_params:  list of (w, b) f32 for linear1/2/3/fc_out.
    Returns (L, B, 1) f32."""
    B, S, in0 = x.shape
    L = len(lstm_params)
    H = hidden_size

    # Pad batch (sublane dim) to a multiple of 8; flatten time-major to (S*B, 9).
    B_pad = ((B + 7) // 8) * 8
    x_sbd = jnp.transpose(x, (1, 0, 2))                          # (S, B, in0)
    if B_pad != B:
        x_sbd = jnp.pad(x_sbd, ((0, 0), (0, B_pad - B), (0, 0)))
    x_flat = x_sbd.reshape(S * B_pad, in0)

    flat = []
    in_specs = [pl.BlockSpec(x_flat.shape, lambda: (0, 0))]

    # Fold the 0.5 pre-scale (single-tanh gate trick) into the i/f/o columns;
    # cast matmul weights to bf16 (biases stay f32).  Scaling by 0.5 is exact.
    col_scale = jnp.concatenate(
        [jnp.full((3 * H,), 0.5, jnp.float32), jnp.ones((H,), jnp.float32)])
    for (w_ih, w_hh, b) in lstm_params:
        w_ih_s = (w_ih * col_scale).astype(jnp.bfloat16)
        w_hh_s = (w_hh * col_scale).astype(jnp.bfloat16)
        b_s = b * col_scale
        flat += [w_ih_s, w_hh_s, b_s]
        in_specs += [pl.BlockSpec(w_ih_s.shape, lambda: (0, 0)),
                     pl.BlockSpec(w_hh_s.shape, lambda: (0, 0)),
                     pl.BlockSpec(b_s.shape, lambda: (0, 0))]

    # Lane-dense MLP head: zero-pad widths to 128 (zero rows in the following
    # weight keep ReLU semantics exact); weights bf16, biases f32.
    for idx, (w, b) in enumerate(mlp_params):
        fi, fo = w.shape
        fi_p = fi if idx == 0 else 128
        fo_p = 128
        w_p = jnp.zeros((fi_p, fo_p), jnp.float32).at[:fi, :fo].set(w)
        b_p = jnp.zeros((1, fo_p), jnp.float32).at[:, :fo].set(b)
        w_p = w_p.astype(jnp.bfloat16)
        flat += [w_p, b_p]
        in_specs += [pl.BlockSpec(w_p.shape, lambda: (0, 0)),
                     pl.BlockSpec(b_p.shape, lambda: (0, 0))]

    out = pl.pallas_call(
        _make_fused_kernel(L, H, S, B_pad),
        out_shape=jax.ShapeDtypeStruct((L * B_pad, 128), jnp.float32),
        grid=(),
        in_specs=in_specs,
        out_specs=pl.BlockSpec((L * B_pad, 128), lambda: (0, 0)),
        scratch_shapes=[
            pltpu.VMEM((S * B_pad, 4 * H), jnp.float32),   # gate pre-activations
            pltpu.VMEM((S * B_pad, H), jnp.float32),       # per-step layer hiddens
        ],
        compiler_params=pltpu.CompilerParams(
            vmem_limit_bytes=16 * 1024 * 1024),
    )(x_flat, *flat)

    # Keep only the real output column and the real batch rows.
    return out[:, :1].reshape(L, B_pad, 1)[:, :B, :]


# -----------------------------------------------------------------------------
# Parameter init (deterministic, PyTorch-style uniform ranges)
# -----------------------------------------------------------------------------
def init_params(key, input_size, hidden_size, rnn_layers):
    H = hidden_size
    k_lstm = 1.0 / jnp.sqrt(jnp.float32(H))
    lstm_params = []
    for l in range(rnn_layers):
        in_l = input_size if l == 0 else H
        key, k1, k2, k3, k4 = jax.random.split(key, 5)
        # Stored transposed (in, 4H) with gate columns [i | f | o | g].
        w_ih = jax.random.uniform(k1, (in_l, 4 * H), jnp.float32, -k_lstm, k_lstm)
        w_hh = jax.random.uniform(k2, (H, 4 * H), jnp.float32, -k_lstm, k_lstm)
        b_ih = jax.random.uniform(k3, (1, 4 * H), jnp.float32, -k_lstm, k_lstm)
        b_hh = jax.random.uniform(k4, (1, 4 * H), jnp.float32, -k_lstm, k_lstm)
        lstm_params.append((w_ih, w_hh, b_ih + b_hh))

    dims = [(H, 128), (128, 64), (64, 16), (16, 1)]
    mlp_params = []
    for (fi, fo) in dims:
        key, k1, k2 = jax.random.split(key, 3)
        bound = 1.0 / jnp.sqrt(jnp.float32(fi))
        w = jax.random.uniform(k1, (fi, fo), jnp.float32, -bound, bound)
        b = jax.random.uniform(k2, (1, fo), jnp.float32, -bound, bound)
        mlp_params.append((w, b))
    return lstm_params, mlp_params


# -----------------------------------------------------------------------------
# Pure-JAX reference (mirrors the kernel's bf16 matmul-operand casts so the
# comparison isolates kernel correctness, not bf16 quantization).
# -----------------------------------------------------------------------------
def ref_forward(x, lstm_params, mlp_params, hidden_size):
    B, S, _ = x.shape
    L = len(lstm_params)
    H = hidden_size
    h = [jnp.zeros((B, H), jnp.float32) for _ in range(L)]
    c = [jnp.zeros((B, H), jnp.float32) for _ in range(L)]
    for t in range(S):
        inp = x[:, t]
        for l, (w_ih, w_hh, b) in enumerate(lstm_params):
            gates = (jnp.dot(inp.astype(jnp.bfloat16), w_ih.astype(jnp.bfloat16),
                             preferred_element_type=jnp.float32) + b
                     + jnp.dot(h[l].astype(jnp.bfloat16), w_hh.astype(jnp.bfloat16),
                               preferred_element_type=jnp.float32))
            i_g = jax.nn.sigmoid(gates[:, 0 * H:1 * H])
            f_g = jax.nn.sigmoid(gates[:, 1 * H:2 * H])
            o_g = jax.nn.sigmoid(gates[:, 2 * H:3 * H])
            g_g = jnp.tanh(gates[:, 3 * H:4 * H])
            c[l] = f_g * c[l] + i_g * g_g
            h[l] = o_g * jnp.tanh(c[l])
            inp = h[l]
    z = jnp.concatenate(h, axis=0)                               # (L*B, H)
    for i, (w, b) in enumerate(mlp_params):
        z = jnp.dot(z.astype(jnp.bfloat16), w.astype(jnp.bfloat16),
                    preferred_element_type=jnp.float32) + b
        if i < 3:
            z = jnp.maximum(z, 0.0)
    return z.reshape(L, B, 1)


if __name__ == "__main__":
    batch_size, sequence_size, hidden_size, rnn_layers = 2, 8, 32, 2
    input_size = 9  # fixed by the module (LSTM input_size=9)

    key = jax.random.PRNGKey(0)
    key, kx = jax.random.split(key)
    x = jax.random.normal(kx, (batch_size, sequence_size, input_size), jnp.float32)

    lstm_params, mlp_params = init_params(key, input_size, hidden_size, rnn_layers)

    fwd = jax.jit(functools.partial(rnn_model_forward, hidden_size=hidden_size))
    out = jax.block_until_ready(fwd(x, lstm_params, mlp_params))

    ref = ref_forward(x, lstm_params, mlp_params, hidden_size)
    assert out.shape == (rnn_layers, batch_size, 1)
    assert jnp.allclose(out, ref, atol=2e-3, rtol=2e-3), (out, ref)

    print("KERNEL_OK")
</pallas_src>

<mosaic_0001>
module attributes {stable_mosaic.version = 11 : i64} {
  func.func @kernel(%arg0: memref<64x9xf32, #tpu.memory_space<vmem>>, %arg1: memref<9x128xbf16, #tpu.memory_space<vmem>>, %arg2: memref<32x128xbf16, #tpu.memory_space<vmem>>, %arg3: memref<1x128xf32, #tpu.memory_space<vmem>>, %arg4: memref<32x128xbf16, #tpu.memory_space<vmem>>, %arg5: memref<32x128xbf16, #tpu.memory_space<vmem>>, %arg6: memref<1x128xf32, #tpu.memory_space<vmem>>, %arg7: memref<32x128xbf16, #tpu.memory_space<vmem>>, %arg8: memref<1x128xf32, #tpu.memory_space<vmem>>, %arg9: memref<128x128xbf16, #tpu.memory_space<vmem>>, %arg10: memref<1x128xf32, #tpu.memory_space<vmem>>, %arg11: memref<128x128xbf16, #tpu.memory_space<vmem>>, %arg12: memref<1x128xf32, #tpu.memory_space<vmem>>, %arg13: memref<128x128xbf16, #tpu.memory_space<vmem>>, %arg14: memref<1x128xf32, #tpu.memory_space<vmem>>, %arg15: memref<16x128xf32, #tpu.memory_space<vmem>>, %arg16: memref<64x128xf32, #tpu.memory_space<vmem>>, %arg17: memref<64x32xf32, #tpu.memory_space<vmem>>) attributes {dimension_semantics = [], scalar_prefetch = 0 : i64, scratch_operands = 2 : i64, tpu.core_type = #tpu.core_type<tc>} {
    %0 = tpu.iota {dimensions = array<i32: 1>} : vector<8x128xi32>
    %c96_i32 = arith.constant 96 : i32
    %1 = vector.broadcast %c96_i32 : i32 to vector<8x128xi32>
    %2 = arith.cmpi slt, %0, %1 : vector<8x128xi32>
    %cst = arith.constant 5.000000e-01 : f32
    %cst_0 = arith.constant 1.000000e+00 : f32
    %3 = vector.broadcast %cst : f32 to vector<8x128xf32>
    %4 = vector.broadcast %cst_0 : f32 to vector<8x128xf32>
    %5 = arith.select %2, %3, %4 : vector<8x128xi1>, vector<8x128xf32>
    %cst_1 = arith.constant 5.000000e-01 : f32
    %cst_2 = arith.constant 0.000000e+00 : f32
    %6 = vector.broadcast %cst_1 : f32 to vector<8x128xf32>
    %7 = vector.broadcast %cst_2 : f32 to vector<8x128xf32>
    %8 = arith.select %2, %6, %7 : vector<8x128xi1>, vector<8x128xf32>
    %c0 = arith.constant 0 : index
    %c0_3 = arith.constant 0 : index
    %9 = vector.load %arg1[%c0, %c0_3] : memref<9x128xbf16, #tpu.memory_space<vmem>>, vector<9x128xbf16>
    %c0_4 = arith.constant 0 : index
    %c0_5 = arith.constant 0 : index
    %10 = vector.load %arg2[%c0_4, %c0_5] : memref<32x128xbf16, #tpu.memory_space<vmem>>, vector<32x128xbf16>
    %c0_6 = arith.constant 0 : index
    %c0_7 = arith.constant 0 : index
    %11 = vector.load %arg3[%c0_6, %c0_7] : memref<1x128xf32, #tpu.memory_space<vmem>>, vector<1x128xf32>
    %c0_8 = arith.constant 0 : index
    %c0_9 = arith.constant 0 : index
    %12 = vector.load %arg0[%c0_8, %c0_9] : memref<64x9xf32, #tpu.memory_space<vmem>>, vector<64x9xf32>
    %13 = arith.truncf %12 : vector<64x9xf32> to vector<64x9xbf16>
    %cst_10 = arith.constant dense<0.000000e+00> : vector<64x128xf32>
    %14 = tpu.matmul %13, %9, %cst_10 {dimension_numbers = #tpu.dot_dimension_numbers<[1], [0], [0], [1], [0, 0, 1, 1], [], []>} : vector<64x9xbf16>, vector<9x128xbf16>, vector<64x128xf32> -> vector<64x128xf32>
    %15 = vector.broadcast %11 : vector<1x128xf32> to vector<64x128xf32>
    %16 = arith.addf %14, %15 : vector<64x128xf32>
    %c0_11 = arith.constant 0 : index
    %c0_12 = arith.constant 0 : index
    %17 = vector.load %arg16[%c0_11, %c0_12] : memref<64x128xf32, #tpu.memory_space<vmem>>, vector<64x128xf32>
    tpu.vector_store %arg16[%c0_11, %c0_12], %16 {strides = array<i32>} : memref<64x128xf32, #tpu.memory_space<vmem>>, vector<64x128xf32>,
    %cst_13 = arith.constant 0.000000e+00 : f32
    %18 = vector.broadcast %cst_13 : f32 to vector<8x32xf32>
    %cst_14 = arith.constant 0.000000e+00 : f32
    %19 = vector.broadcast %cst_14 : f32 to vector<8x32xf32>
    %c0_15 = arith.constant 0 : index
    %c0_16 = arith.constant 0 : index
    %20 = vector.load %arg16[%c0_15, %c0_16] : memref<64x128xf32, #tpu.memory_space<vmem>>, vector<8x128xf32>
    %21 = arith.truncf %18 : vector<8x32xf32> to vector<8x32xbf16>
    %cst_17 = arith.constant dense<0.000000e+00> : vector<8x128xf32>
    %22 = tpu.matmul %21, %10, %cst_17 {dimension_numbers = #tpu.dot_dimension_numbers<[1], [0], [0], [1], [0, 0, 1, 1], [], []>} : vector<8x32xbf16>, vector<32x128xbf16>, vector<8x128xf32> -> vector<8x128xf32>
    %23 = arith.addf %20, %22 : vector<8x128xf32>
    %24 = math.tanh %23 : vector<8x128xf32>
    %25 = arith.mulf %24, %5 : vector<8x128xf32>
    %26 = arith.addf %25, %8 : vector<8x128xf32>
    %27 = vector.extract_strided_slice %26 {offsets = [0, 0], sizes = [8, 32], strides = [1, 1]} : vector<8x128xf32> to vector<8x32xf32>
    %28 = vector.extract_strided_slice %26 {offsets = [0, 32], sizes = [8, 32], strides = [1, 1]} : vector<8x128xf32> to vector<8x32xf32>
    %29 = vector.extract_strided_slice %26 {offsets = [0, 64], sizes = [8, 32], strides = [1, 1]} : vector<8x128xf32> to vector<8x32xf32>
    %30 = vector.extract_strided_slice %26 {offsets = [0, 96], sizes = [8, 32], strides = [1, 1]} : vector<8x128xf32> to vector<8x32xf32>
    %31 = arith.mulf %28, %19 : vector<8x32xf32>
    %32 = arith.mulf %27, %30 : vector<8x32xf32>
    %33 = arith.addf %31, %32 : vector<8x32xf32>
    %34 = math.tanh %33 : vector<8x32xf32>
    %35 = arith.mulf %29, %34 : vector<8x32xf32>
    %c0_18 = arith.constant 0 : index
    %c0_19 = arith.constant 0 : index
    %36 = vector.load %arg17[%c0_18, %c0_19] : memref<64x32xf32, #tpu.memory_space<vmem>>, vector<8x32xf32>
    tpu.vector_store %arg17[%c0_18, %c0_19], %35 {strides = array<i32>} : memref<64x32xf32, #tpu.memory_space<vmem>>, vector<8x32xf32>,
    %c8 = arith.constant 8 : index
    %c0_20 = arith.constant 0 : index
    %37 = vector.load %arg16[%c8, %c0_20] : memref<64x128xf32, #tpu.memory_space<vmem>>, vector<8x128xf32>
    %38 = arith.truncf %35 : vector<8x32xf32> to vector<8x32xbf16>
    %cst_21 = arith.constant dense<0.000000e+00> : vector<8x128xf32>
    %39 = tpu.matmul %38, %10, %cst_21 {dimension_numbers = #tpu.dot_dimension_numbers<[1], [0], [0], [1], [0, 0, 1, 1], [], []>} : vector<8x32xbf16>, vector<32x128xbf16>, vector<8x128xf32> -> vector<8x128xf32>
    %40 = arith.addf %37, %39 : vector<8x128xf32>
    %41 = math.tanh %40 : vector<8x128xf32>
    %42 = arith.mulf %41, %5 : vector<8x128xf32>
    %43 = arith.addf %42, %8 : vector<8x128xf32>
    %44 = vector.extract_strided_slice %43 {offsets = [0, 0], sizes = [8, 32], strides = [1, 1]} : vector<8x128xf32> to vector<8x32xf32>
    %45 = vector.extract_strided_slice %43 {offsets = [0, 32], sizes = [8, 32], strides = [1, 1]} : vector<8x128xf32> to vector<8x32xf32>
    %46 = vector.extract_strided_slice %43 {offsets = [0, 64], sizes = [8, 32], strides = [1, 1]} : vector<8x128xf32> to vector<8x32xf32>
    %47 = vector.extract_strided_slice %43 {offsets = [0, 96], sizes = [8, 32], strides = [1, 1]} : vector<8x128xf32> to vector<8x32xf32>
    %48 = arith.mulf %45, %33 : vector<8x32xf32>
    %49 = arith.mulf %44, %47 : vector<8x32xf32>
    %50 = arith.addf %48, %49 : vector<8x32xf32>
    %51 = math.tanh %50 : vector<8x32xf32>
    %52 = arith.mulf %46, %51 : vector<8x32xf32>
    %c8_22 = arith.constant 8 : index
    %c0_23 = arith.constant 0 : index
    %53 = vector.load %arg17[%c8_22, %c0_23] : memref<64x32xf32, #tpu.memory_space<vmem>>, vector<8x32xf32>
    tpu.vector_store %arg17[%c8_22, %c0_23], %52 {strides = array<i32>} : memref<64x32xf32, #tpu.memory_space<vmem>>, vector<8x32xf32>,
    %c16 = arith.constant 16 : index
    %c0_24 = arith.constant 0 : index
    %54 = vector.load %arg16[%c16, %c0_24] : memref<64x128xf32, #tpu.memory_space<vmem>>, vector<8x128xf32>
    %55 = arith.truncf %52 : vector<8x32xf32> to vector<8x32xbf16>
    %cst_25 = arith.constant dense<0.000000e+00> : vector<8x128xf32>
    %56 = tpu.matmul %55, %10, %cst_25 {dimension_numbers = #tpu.dot_dimension_numbers<[1], [0], [0], [1], [0, 0, 1, 1], [], []>} : vector<8x32xbf16>, vector<32x128xbf16>, vector<8x128xf32> -> vector<8x128xf32>
    %57 = arith.addf %54, %56 : vector<8x128xf32>
    %58 = math.tanh %57 : vector<8x128xf32>
    %59 = arith.mulf %58, %5 : vector<8x128xf32>
    %60 = arith.addf %59, %8 : vector<8x128xf32>
    %61 = vector.extract_strided_slice %60 {offsets = [0, 0], sizes = [8, 32], strides = [1, 1]} : vector<8x128xf32> to vector<8x32xf32>
    %62 = vector.extract_strided_slice %60 {offsets = [0, 32], sizes = [8, 32], strides = [1, 1]} : vector<8x128xf32> to vector<8x32xf32>
    %63 = vector.extract_strided_slice %60 {offsets = [0, 64], sizes = [8, 32], strides = [1, 1]} : vector<8x128xf32> to vector<8x32xf32>
    %64 = vector.extract_strided_slice %60 {offsets = [0, 96], sizes = [8, 32], strides = [1, 1]} : vector<8x128xf32> to vector<8x32xf32>
    %65 = arith.mulf %62, %50 : vector<8x32xf32>
    %66 = arith.mulf %61, %64 : vector<8x32xf32>
    %67 = arith.addf %65, %66 : vector<8x32xf32>
    %68 = math.tanh %67 : vector<8x32xf32>
    %69 = arith.mulf %63, %68 : vector<8x32xf32>
    %c16_26 = arith.constant 16 : index
    %c0_27 = arith.constant 0 : index
    %70 = vector.load %arg17[%c16_26, %c0_27] : memref<64x32xf32, #tpu.memory_space<vmem>>, vector<8x32xf32>
    tpu.vector_store %arg17[%c16_26, %c0_27], %69 {strides = array<i32>} : memref<64x32xf32, #tpu.memory_space<vmem>>, vector<8x32xf32>,
    %c24 = arith.constant 24 : index
    %c0_28 = arith.constant 0 : index
    %71 = vector.load %arg16[%c24, %c0_28] : memref<64x128xf32, #tpu.memory_space<vmem>>, vector<8x128xf32>
    %72 = arith.truncf %69 : vector<8x32xf32> to vector<8x32xbf16>
    %cst_29 = arith.constant dense<0.000000e+00> : vector<8x128xf32>
    %73 = tpu.matmul %72, %10, %cst_29 {dimension_numbers = #tpu.dot_dimension_numbers<[1], [0], [0], [1], [0, 0, 1, 1], [], []>} : vector<8x32xbf16>, vector<32x128xbf16>, vector<8x128xf32> -> vector<8x128xf32>
    %74 = arith.addf %71, %73 : vector<8x128xf32>
    %75 = math.tanh %74 : vector<8x128xf32>
    %76 = arith.mulf %75, %5 : vector<8x128xf32>
    %77 = arith.addf %76, %8 : vector<8x128xf32>
    %78 = vector.extract_strided_slice %77 {offsets = [0, 0], sizes = [8, 32], strides = [1, 1]} : vector<8x128xf32> to vector<8x32xf32>
    %79 = vector.extract_strided_slice %77 {offsets = [0, 32], sizes = [8, 32], strides = [1, 1]} : vector<8x128xf32> to vector<8x32xf32>
    %80 = vector.extract_strided_slice %77 {offsets = [0, 64], sizes = [8, 32], strides = [1, 1]} : vector<8x128xf32> to vector<8x32xf32>
    %81 = vector.extract_strided_slice %77 {offsets = [0, 96], sizes = [8, 32], strides = [1, 1]} : vector<8x128xf32> to vector<8x32xf32>
    %82 = arith.mulf %79, %67 : vector<8x32xf32>
    %83 = arith.mulf %78, %81 : vector<8x32xf32>
    %84 = arith.addf %82, %83 : vector<8x32xf32>
    %85 = math.tanh %84 : vector<8x32xf32>
    %86 = arith.mulf %80, %85 : vector<8x32xf32>
    %c24_30 = arith.constant 24 : index
    %c0_31 = arith.constant 0 : index
    %87 = vector.load %arg17[%c24_30, %c0_31] : memref<64x32xf32, #tpu.memory_space<vmem>>, vector<8x32xf32>
    tpu.vector_store %arg17[%c24_30, %c0_31], %86 {strides = array<i32>} : memref<64x32xf32, #tpu.memory_space<vmem>>, vector<8x32xf32>,
    %c32 = arith.constant 32 : index
    %c0_32 = arith.constant 0 : index
    %88 = vector.load %arg16[%c32, %c0_32] : memref<64x128xf32, #tpu.memory_space<vmem>>, vector<8x128xf32>
    %89 = arith.truncf %86 : vector<8x32xf32> to vector<8x32xbf16>
    %cst_33 = arith.constant dense<0.000000e+00> : vector<8x128xf32>
    %90 = tpu.matmul %89, %10, %cst_33 {dimension_numbers = #tpu.dot_dimension_numbers<[1], [0], [0], [1], [0, 0, 1, 1], [], []>} : vector<8x32xbf16>, vector<32x128xbf16>, vector<8x128xf32> -> vector<8x128xf32>
    %91 = arith.addf %88, %90 : vector<8x128xf32>
    %92 = math.tanh %91 : vector<8x128xf32>
    %93 = arith.mulf %92, %5 : vector<8x128xf32>
    %94 = arith.addf %93, %8 : vector<8x128xf32>
    %95 = vector.extract_strided_slice %94 {offsets = [0, 0], sizes = [8, 32], strides = [1, 1]} : vector<8x128xf32> to vector<8x32xf32>
    %96 = vector.extract_strided_slice %94 {offsets = [0, 32], sizes = [8, 32], strides = [1, 1]} : vector<8x128xf32> to vector<8x32xf32>
    %97 = vector.extract_strided_slice %94 {offsets = [0, 64], sizes = [8, 32], strides = [1, 1]} : vector<8x128xf32> to vector<8x32xf32>
    %98 = vector.extract_strided_slice %94 {offsets = [0, 96], sizes = [8, 32], strides = [1, 1]} : vector<8x128xf32> to vector<8x32xf32>
    %99 = arith.mulf %96, %84 : vector<8x32xf32>
    %100 = arith.mulf %95, %98 : vector<8x32xf32>
    %101 = arith.addf %99, %100 : vector<8x32xf32>
    %102 = math.tanh %101 : vector<8x32xf32>
    %103 = arith.mulf %97, %102 : vector<8x32xf32>
    %c32_34 = arith.constant 32 : index
    %c0_35 = arith.constant 0 : index
    %104 = vector.load %arg17[%c32_34, %c0_35] : memref<64x32xf32, #tpu.memory_space<vmem>>, vector<8x32xf32>
    tpu.vector_store %arg17[%c32_34, %c0_35], %103 {strides = array<i32>} : memref<64x32xf32, #tpu.memory_space<vmem>>, vector<8x32xf32>,
    %c40 = arith.constant 40 : index
    %c0_36 = arith.constant 0 : index
    %105 = vector.load %arg16[%c40, %c0_36] : memref<64x128xf32, #tpu.memory_space<vmem>>, vector<8x128xf32>
    %106 = arith.truncf %103 : vector<8x32xf32> to vector<8x32xbf16>
    %cst_37 = arith.constant dense<0.000000e+00> : vector<8x128xf32>
    %107 = tpu.matmul %106, %10, %cst_37 {dimension_numbers = #tpu.dot_dimension_numbers<[1], [0], [0], [1], [0, 0, 1, 1], [], []>} : vector<8x32xbf16>, vector<32x128xbf16>, vector<8x128xf32> -> vector<8x128xf32>
    %108 = arith.addf %105, %107 : vector<8x128xf32>
    %109 = math.tanh %108 : vector<8x128xf32>
    %110 = arith.mulf %109, %5 : vector<8x128xf32>
    %111 = arith.addf %110, %8 : vector<8x128xf32>
    %112 = vector.extract_strided_slice %111 {offsets = [0, 0], sizes = [8, 32], strides = [1, 1]} : vector<8x128xf32> to vector<8x32xf32>
    %113 = vector.extract_strided_slice %111 {offsets = [0, 32], sizes = [8, 32], strides = [1, 1]} : vector<8x128xf32> to vector<8x32xf32>
    %114 = vector.extract_strided_slice %111 {offsets = [0, 64], sizes = [8, 32], strides = [1, 1]} : vector<8x128xf32> to vector<8x32xf32>
    %115 = vector.extract_strided_slice %111 {offsets = [0, 96], sizes = [8, 32], strides = [1, 1]} : vector<8x128xf32> to vector<8x32xf32>
    %116 = arith.mulf %113, %101 : vector<8x32xf32>
    %117 = arith.mulf %112, %115 : vector<8x32xf32>
    %118 = arith.addf %116, %117 : vector<8x32xf32>
    %119 = math.tanh %118 : vector<8x32xf32>
    %120 = arith.mulf %114, %119 : vector<8x32xf32>
    %c40_38 = arith.constant 40 : index
    %c0_39 = arith.constant 0 : index
    %121 = vector.load %arg17[%c40_38, %c0_39] : memref<64x32xf32, #tpu.memory_space<vmem>>, vector<8x32xf32>
    tpu.vector_store %arg17[%c40_38, %c0_39], %120 {strides = array<i32>} : memref<64x32xf32, #tpu.memory_space<vmem>>, vector<8x32xf32>,
    %c48 = arith.constant 48 : index
    %c0_40 = arith.constant 0 : index
    %122 = vector.load %arg16[%c48, %c0_40] : memref<64x128xf32, #tpu.memory_space<vmem>>, vector<8x128xf32>
    %123 = arith.truncf %120 : vector<8x32xf32> to vector<8x32xbf16>
    %cst_41 = arith.constant dense<0.000000e+00> : vector<8x128xf32>
    %124 = tpu.matmul %123, %10, %cst_41 {dimension_numbers = #tpu.dot_dimension_numbers<[1], [0], [0], [1], [0, 0, 1, 1], [], []>} : vector<8x32xbf16>, vector<32x128xbf16>, vector<8x128xf32> -> vector<8x128xf32>
    %125 = arith.addf %122, %124 : vector<8x128xf32>
    %126 = math.tanh %125 : vector<8x128xf32>
    %127 = arith.mulf %126, %5 : vector<8x128xf32>
    %128 = arith.addf %127, %8 : vector<8x128xf32>
    %129 = vector.extract_strided_slice %128 {offsets = [0, 0], sizes = [8, 32], strides = [1, 1]} : vector<8x128xf32> to vector<8x32xf32>
    %130 = vector.extract_strided_slice %128 {offsets = [0, 32], sizes = [8, 32], strides = [1, 1]} : vector<8x128xf32> to vector<8x32xf32>
    %131 = vector.extract_strided_slice %128 {offsets = [0, 64], sizes = [8, 32], strides = [1, 1]} : vector<8x128xf32> to vector<8x32xf32>
    %132 = vector.extract_strided_slice %128 {offsets = [0, 96], sizes = [8, 32], strides = [1, 1]} : vector<8x128xf32> to vector<8x32xf32>
    %133 = arith.mulf %130, %118 : vector<8x32xf32>
    %134 = arith.mulf %129, %132 : vector<8x32xf32>
    %135 = arith.addf %133, %134 : vector<8x32xf32>
    %136 = math.tanh %135 : vector<8x32xf32>
    %137 = arith.mulf %131, %136 : vector<8x32xf32>
    %c48_42 = arith.constant 48 : index
    %c0_43 = arith.constant 0 : index
    %138 = vector.load %arg17[%c48_42, %c0_43] : memref<64x32xf32, #tpu.memory_space<vmem>>, vector<8x32xf32>
    tpu.vector_store %arg17[%c48_42, %c0_43], %137 {strides = array<i32>} : memref<64x32xf32, #tpu.memory_space<vmem>>, vector<8x32xf32>,
    %c56 = arith.constant 56 : index
    %c0_44 = arith.constant 0 : index
    %139 = vector.load %arg16[%c56, %c0_44] : memref<64x128xf32, #tpu.memory_space<vmem>>, vector<8x128xf32>
    %140 = arith.truncf %137 : vector<8x32xf32> to vector<8x32xbf16>
    %cst_45 = arith.constant dense<0.000000e+00> : vector<8x128xf32>
    %141 = tpu.matmul %140, %10, %cst_45 {dimension_numbers = #tpu.dot_dimension_numbers<[1], [0], [0], [1], [0, 0, 1, 1], [], []>} : vector<8x32xbf16>, vector<32x128xbf16>, vector<8x128xf32> -> vector<8x128xf32>
    %142 = arith.addf %139, %141 : vector<8x128xf32>
    %143 = math.tanh %142 : vector<8x128xf32>
    %144 = arith.mulf %143, %5 : vector<8x128xf32>
    %145 = arith.addf %144, %8 : vector<8x128xf32>
    %146 = vector.extract_strided_slice %145 {offsets = [0, 0], sizes = [8, 32], strides = [1, 1]} : vector<8x128xf32> to vector<8x32xf32>
    %147 = vector.extract_strided_slice %145 {offsets = [0, 32], sizes = [8, 32], strides = [1, 1]} : vector<8x128xf32> to vector<8x32xf32>
    %148 = vector.extract_strided_slice %145 {offsets = [0, 64], sizes = [8, 32], strides = [1, 1]} : vector<8x128xf32> to vector<8x32xf32>
    %149 = vector.extract_strided_slice %145 {offsets = [0, 96], sizes = [8, 32], strides = [1, 1]} : vector<8x128xf32> to vector<8x32xf32>
    %150 = arith.mulf %147, %135 : vector<8x32xf32>
    %151 = arith.mulf %146, %149 : vector<8x32xf32>
    %152 = arith.addf %150, %151 : vector<8x32xf32>
    %153 = math.tanh %152 : vector<8x32xf32>
    %154 = arith.mulf %148, %153 : vector<8x32xf32>
    %c56_46 = arith.constant 56 : index
    %c0_47 = arith.constant 0 : index
    %155 = vector.load %arg17[%c56_46, %c0_47] : memref<64x32xf32, #tpu.memory_space<vmem>>, vector<8x32xf32>
    tpu.vector_store %arg17[%c56_46, %c0_47], %154 {strides = array<i32>} : memref<64x32xf32, #tpu.memory_space<vmem>>, vector<8x32xf32>,
    %c0_48 = arith.constant 0 : index
    %c0_49 = arith.constant 0 : index
    %156 = vector.load %arg4[%c0_48, %c0_49] : memref<32x128xbf16, #tpu.memory_space<vmem>>, vector<32x128xbf16>
    %c0_50 = arith.constant 0 : index
    %c0_51 = arith.constant 0 : index
    %157 = vector.load %arg5[%c0_50, %c0_51] : memref<32x128xbf16, #tpu.memory_space<vmem>>, vector<32x128xbf16>
    %c0_52 = arith.constant 0 : index
    %c0_53 = arith.constant 0 : index
    %158 = vector.load %arg6[%c0_52, %c0_53] : memref<1x128xf32, #tpu.memory_space<vmem>>, vector<1x128xf32>
    %c0_54 = arith.constant 0 : index
    %c0_55 = arith.constant 0 : index
    %159 = vector.load %arg17[%c0_54, %c0_55] : memref<64x32xf32, #tpu.memory_space<vmem>>, vector<64x32xf32>
    %160 = arith.truncf %159 : vector<64x32xf32> to vector<64x32xbf16>
    %cst_56 = arith.constant dense<0.000000e+00> : vector<64x128xf32>
    %161 = tpu.matmul %160, %156, %cst_56 {dimension_numbers = #tpu.dot_dimension_numbers<[1], [0], [0], [1], [0, 0, 1, 1], [], []>} : vector<64x32xbf16>, vector<32x128xbf16>, vector<64x128xf32> -> vector<64x128xf32>
    %162 = vector.broadcast %158 : vector<1x128xf32> to vector<64x128xf32>
    %163 = arith.addf %161, %162 : vector<64x128xf32>
    %c0_57 = arith.constant 0 : index
    %c0_58 = arith.constant 0 : index
    %164 = vector.load %arg16[%c0_57, %c0_58] : memref<64x128xf32, #tpu.memory_space<vmem>>, vector<64x128xf32>
    tpu.vector_store %arg16[%c0_57, %c0_58], %163 {strides = array<i32>} : memref<64x128xf32, #tpu.memory_space<vmem>>, vector<64x128xf32>,
    %cst_59 = arith.constant 0.000000e+00 : f32
    %165 = vector.broadcast %cst_59 : f32 to vector<8x32xf32>
    %cst_60 = arith.constant 0.000000e+00 : f32
    %166 = vector.broadcast %cst_60 : f32 to vector<8x32xf32>
    %c0_61 = arith.constant 0 : index
    %c0_62 = arith.constant 0 : index
    %167 = vector.load %arg16[%c0_61, %c0_62] : memref<64x128xf32, #tpu.memory_space<vmem>>, vector<8x128xf32>
    %168 = arith.truncf %165 : vector<8x32xf32> to vector<8x32xbf16>
    %cst_63 = arith.constant dense<0.000000e+00> : vector<8x128xf32>
    %169 = tpu.matmul %168, %157, %cst_63 {dimension_numbers = #tpu.dot_dimension_numbers<[1], [0], [0], [1], [0, 0, 1, 1], [], []>} : vector<8x32xbf16>, vector<32x128xbf16>, vector<8x128xf32> -> vector<8x128xf32>
    %170 = arith.addf %167, %169 : vector<8x128xf32>
    %171 = math.tanh %170 : vector<8x128xf32>
    %172 = arith.mulf %171, %5 : vector<8x128xf32>
    %173 = arith.addf %172, %8 : vector<8x128xf32>
    %174 = vector.extract_strided_slice %173 {offsets = [0, 0], sizes = [8, 32], strides = [1, 1]} : vector<8x128xf32> to vector<8x32xf32>
    %175 = vector.extract_strided_slice %173 {offsets = [0, 32], sizes = [8, 32], strides = [1, 1]} : vector<8x128xf32> to vector<8x32xf32>
    %176 = vector.extract_strided_slice %173 {offsets = [0, 64], sizes = [8, 32], strides = [1, 1]} : vector<8x128xf32> to vector<8x32xf32>
    %177 = vector.extract_strided_slice %173 {offsets = [0, 96], sizes = [8, 32], strides = [1, 1]} : vector<8x128xf32> to vector<8x32xf32>
    %178 = arith.mulf %175, %166 : vector<8x32xf32>
    %179 = arith.mulf %174, %177 : vector<8x32xf32>
    %180 = arith.addf %178, %179 : vector<8x32xf32>
    %181 = math.tanh %180 : vector<8x32xf32>
    %182 = arith.mulf %176, %181 : vector<8x32xf32>
    %c8_64 = arith.constant 8 : index
    %c0_65 = arith.constant 0 : index
    %183 = vector.load %arg16[%c8_64, %c0_65] : memref<64x128xf32, #tpu.memory_space<vmem>>, vector<8x128xf32>
    %184 = arith.truncf %182 : vector<8x32xf32> to vector<8x32xbf16>
    %cst_66 = arith.constant dense<0.000000e+00> : vector<8x128xf32>
    %185 = tpu.matmul %184, %157, %cst_66 {dimension_numbers = #tpu.dot_dimension_numbers<[1], [0], [0], [1], [0, 0, 1, 1], [], []>} : vector<8x32xbf16>, vector<32x128xbf16>, vector<8x128xf32> -> vector<8x128xf32>
    %186 = arith.addf %183, %185 : vector<8x128xf32>
    %187 = math.tanh %186 : vector<8x128xf32>
    %188 = arith.mulf %187, %5 : vector<8x128xf32>
    %189 = arith.addf %188, %8 : vector<8x128xf32>
    %190 = vector.extract_strided_slice %189 {offsets = [0, 0], sizes = [8, 32], strides = [1, 1]} : vector<8x128xf32> to vector<8x32xf32>
    %191 = vector.extract_strided_slice %189 {offsets = [0, 32], sizes = [8, 32], strides = [1, 1]} : vector<8x128xf32> to vector<8x32xf32>
    %192 = vector.extract_strided_slice %189 {offsets = [0, 64], sizes = [8, 32], strides = [1, 1]} : vector<8x128xf32> to vector<8x32xf32>
    %193 = vector.extract_strided_slice %189 {offsets = [0, 96], sizes = [8, 32], strides = [1, 1]} : vector<8x128xf32> to vector<8x32xf32>
    %194 = arith.mulf %191, %180 : vector<8x32xf32>
    %195 = arith.mulf %190, %193 : vector<8x32xf32>
    %196 = arith.addf %194, %195 : vector<8x32xf32>
    %197 = math.tanh %196 : vector<8x32xf32>
    %198 = arith.mulf %192, %197 : vector<8x32xf32>
    %c16_67 = arith.constant 16 : index
    %c0_68 = arith.constant 0 : index
    %199 = vector.load %arg16[%c16_67, %c0_68] : memref<64x128xf32, #tpu.memory_space<vmem>>, vector<8x128xf32>
    %200 = arith.truncf %198 : vector<8x32xf32> to vector<8x32xbf16>
    %cst_69 = arith.constant dense<0.000000e+00> : vector<8x128xf32>
    %201 = tpu.matmul %200, %157, %cst_69 {dimension_numbers = #tpu.dot_dimension_numbers<[1], [0], [0], [1], [0, 0, 1, 1], [], []>} : vector<8x32xbf16>, vector<32x128xbf16>, vector<8x128xf32> -> vector<8x128xf32>
    %202 = arith.addf %199, %201 : vector<8x128xf32>
    %203 = math.tanh %202 : vector<8x128xf32>
    %204 = arith.mulf %203, %5 : vector<8x128xf32>
    %205 = arith.addf %204, %8 : vector<8x128xf32>
    %206 = vector.extract_strided_slice %205 {offsets = [0, 0], sizes = [8, 32], strides = [1, 1]} : vector<8x128xf32> to vector<8x32xf32>
    %207 = vector.extract_strided_slice %205 {offsets = [0, 32], sizes = [8, 32], strides = [1, 1]} : vector<8x128xf32> to vector<8x32xf32>
    %208 = vector.extract_strided_slice %205 {offsets = [0, 64], sizes = [8, 32], strides = [1, 1]} : vector<8x128xf32> to vector<8x32xf32>
    %209 = vector.extract_strided_slice %205 {offsets = [0, 96], sizes = [8, 32], strides = [1, 1]} : vector<8x128xf32> to vector<8x32xf32>
    %210 = arith.mulf %207, %196 : vector<8x32xf32>
    %211 = arith.mulf %206, %209 : vector<8x32xf32>
    %212 = arith.addf %210, %211 : vector<8x32xf32>
    %213 = math.tanh %212 : vector<8x32xf32>
    %214 = arith.mulf %208, %213 : vector<8x32xf32>
    %c24_70 = arith.constant 24 : index
    %c0_71 = arith.constant 0 : index
    %215 = vector.load %arg16[%c24_70, %c0_71] : memref<64x128xf32, #tpu.memory_space<vmem>>, vector<8x128xf32>
    %216 = arith.truncf %214 : vector<8x32xf32> to vector<8x32xbf16>
    %cst_72 = arith.constant dense<0.000000e+00> : vector<8x128xf32>
    %217 = tpu.matmul %216, %157, %cst_72 {dimension_numbers = #tpu.dot_dimension_numbers<[1], [0], [0], [1], [0, 0, 1, 1], [], []>} : vector<8x32xbf16>, vector<32x128xbf16>, vector<8x128xf32> -> vector<8x128xf32>
    %218 = arith.addf %215, %217 : vector<8x128xf32>
    %219 = math.tanh %218 : vector<8x128xf32>
    %220 = arith.mulf %219, %5 : vector<8x128xf32>
    %221 = arith.addf %220, %8 : vector<8x128xf32>
    %222 = vector.extract_strided_slice %221 {offsets = [0, 0], sizes = [8, 32], strides = [1, 1]} : vector<8x128xf32> to vector<8x32xf32>
    %223 = vector.extract_strided_slice %221 {offsets = [0, 32], sizes = [8, 32], strides = [1, 1]} : vector<8x128xf32> to vector<8x32xf32>
    %224 = vector.extract_strided_slice %221 {offsets = [0, 64], sizes = [8, 32], strides = [1, 1]} : vector<8x128xf32> to vector<8x32xf32>
    %225 = vector.extract_strided_slice %221 {offsets = [0, 96], sizes = [8, 32], strides = [1, 1]} : vector<8x128xf32> to vector<8x32xf32>
    %226 = arith.mulf %223, %212 : vector<8x32xf32>
    %227 = arith.mulf %222, %225 : vector<8x32xf32>
    %228 = arith.addf %226, %227 : vector<8x32xf32>
    %229 = math.tanh %228 : vector<8x32xf32>
    %230 = arith.mulf %224, %229 : vector<8x32xf32>
    %c32_73 = arith.constant 32 : index
    %c0_74 = arith.constant 0 : index
    %231 = vector.load %arg16[%c32_73, %c0_74] : memref<64x128xf32, #tpu.memory_space<vmem>>, vector<8x128xf32>
    %232 = arith.truncf %230 : vector<8x32xf32> to vector<8x32xbf16>
    %cst_75 = arith.constant dense<0.000000e+00> : vector<8x128xf32>
    %233 = tpu.matmul %232, %157, %cst_75 {dimension_numbers = #tpu.dot_dimension_numbers<[1], [0], [0], [1], [0, 0, 1, 1], [], []>} : vector<8x32xbf16>, vector<32x128xbf16>, vector<8x128xf32> -> vector<8x128xf32>
    %234 = arith.addf %231, %233 : vector<8x128xf32>
    %235 = math.tanh %234 : vector<8x128xf32>
    %236 = arith.mulf %235, %5 : vector<8x128xf32>
    %237 = arith.addf %236, %8 : vector<8x128xf32>
    %238 = vector.extract_strided_slice %237 {offsets = [0, 0], sizes = [8, 32], strides = [1, 1]} : vector<8x128xf32> to vector<8x32xf32>
    %239 = vector.extract_strided_slice %237 {offsets = [0, 32], sizes = [8, 32], strides = [1, 1]} : vector<8x128xf32> to vector<8x32xf32>
    %240 = vector.extract_strided_slice %237 {offsets = [0, 64], sizes = [8, 32], strides = [1, 1]} : vector<8x128xf32> to vector<8x32xf32>
    %241 = vector.extract_strided_slice %237 {offsets = [0, 96], sizes = [8, 32], strides = [1, 1]} : vector<8x128xf32> to vector<8x32xf32>
    %242 = arith.mulf %239, %228 : vector<8x32xf32>
    %243 = arith.mulf %238, %241 : vector<8x32xf32>
    %244 = arith.addf %242, %243 : vector<8x32xf32>
    %245 = math.tanh %244 : vector<8x32xf32>
    %246 = arith.mulf %240, %245 : vector<8x32xf32>
    %c40_76 = arith.constant 40 : index
    %c0_77 = arith.constant 0 : index
    %247 = vector.load %arg16[%c40_76, %c0_77] : memref<64x128xf32, #tpu.memory_space<vmem>>, vector<8x128xf32>
    %248 = arith.truncf %246 : vector<8x32xf32> to vector<8x32xbf16>
    %cst_78 = arith.constant dense<0.000000e+00> : vector<8x128xf32>
    %249 = tpu.matmul %248, %157, %cst_78 {dimension_numbers = #tpu.dot_dimension_numbers<[1], [0], [0], [1], [0, 0, 1, 1], [], []>} : vector<8x32xbf16>, vector<32x128xbf16>, vector<8x128xf32> -> vector<8x128xf32>
    %250 = arith.addf %247, %249 : vector<8x128xf32>
    %251 = math.tanh %250 : vector<8x128xf32>
    %252 = arith.mulf %251, %5 : vector<8x128xf32>
    %253 = arith.addf %252, %8 : vector<8x128xf32>
    %254 = vector.extract_strided_slice %253 {offsets = [0, 0], sizes = [8, 32], strides = [1, 1]} : vector<8x128xf32> to vector<8x32xf32>
    %255 = vector.extract_strided_slice %253 {offsets = [0, 32], sizes = [8, 32], strides = [1, 1]} : vector<8x128xf32> to vector<8x32xf32>
    %256 = vector.extract_strided_slice %253 {offsets = [0, 64], sizes = [8, 32], strides = [1, 1]} : vector<8x128xf32> to vector<8x32xf32>
    %257 = vector.extract_strided_slice %253 {offsets = [0, 96], sizes = [8, 32], strides = [1, 1]} : vector<8x128xf32> to vector<8x32xf32>
    %258 = arith.mulf %255, %244 : vector<8x32xf32>
    %259 = arith.mulf %254, %257 : vector<8x32xf32>
    %260 = arith.addf %258, %259 : vector<8x32xf32>
    %261 = math.tanh %260 : vector<8x32xf32>
    %262 = arith.mulf %256, %261 : vector<8x32xf32>
    %c48_79 = arith.constant 48 : index
    %c0_80 = arith.constant 0 : index
    %263 = vector.load %arg16[%c48_79, %c0_80] : memref<64x128xf32, #tpu.memory_space<vmem>>, vector<8x128xf32>
    %264 = arith.truncf %262 : vector<8x32xf32> to vector<8x32xbf16>
    %cst_81 = arith.constant dense<0.000000e+00> : vector<8x128xf32>
    %265 = tpu.matmul %264, %157, %cst_81 {dimension_numbers = #tpu.dot_dimension_numbers<[1], [0], [0], [1], [0, 0, 1, 1], [], []>} : vector<8x32xbf16>, vector<32x128xbf16>, vector<8x128xf32> -> vector<8x128xf32>
    %266 = arith.addf %263, %265 : vector<8x128xf32>
    %267 = math.tanh %266 : vector<8x128xf32>
    %268 = arith.mulf %267, %5 : vector<8x128xf32>
    %269 = arith.addf %268, %8 : vector<8x128xf32>
    %270 = vector.extract_strided_slice %269 {offsets = [0, 0], sizes = [8, 32], strides = [1, 1]} : vector<8x128xf32> to vector<8x32xf32>
    %271 = vector.extract_strided_slice %269 {offsets = [0, 32], sizes = [8, 32], strides = [1, 1]} : vector<8x128xf32> to vector<8x32xf32>
    %272 = vector.extract_strided_slice %269 {offsets = [0, 64], sizes = [8, 32], strides = [1, 1]} : vector<8x128xf32> to vector<8x32xf32>
    %273 = vector.extract_strided_slice %269 {offsets = [0, 96], sizes = [8, 32], strides = [1, 1]} : vector<8x128xf32> to vector<8x32xf32>
    %274 = arith.mulf %271, %260 : vector<8x32xf32>
    %275 = arith.mulf %270, %273 : vector<8x32xf32>
    %276 = arith.addf %274, %275 : vector<8x32xf32>
    %277 = math.tanh %276 : vector<8x32xf32>
    %278 = arith.mulf %272, %277 : vector<8x32xf32>
    %c56_82 = arith.constant 56 : index
    %c0_83 = arith.constant 0 : index
    %279 = vector.load %arg16[%c56_82, %c0_83] : memref<64x128xf32, #tpu.memory_space<vmem>>, vector<8x128xf32>
    %280 = arith.truncf %278 : vector<8x32xf32> to vector<8x32xbf16>
    %cst_84 = arith.constant dense<0.000000e+00> : vector<8x128xf32>
    %281 = tpu.matmul %280, %157, %cst_84 {dimension_numbers = #tpu.dot_dimension_numbers<[1], [0], [0], [1], [0, 0, 1, 1], [], []>} : vector<8x32xbf16>, vector<32x128xbf16>, vector<8x128xf32> -> vector<8x128xf32>
    %282 = arith.addf %279, %281 : vector<8x128xf32>
    %283 = math.tanh %282 : vector<8x128xf32>
    %284 = arith.mulf %283, %5 : vector<8x128xf32>
    %285 = arith.addf %284, %8 : vector<8x128xf32>
    %286 = vector.extract_strided_slice %285 {offsets = [0, 0], sizes = [8, 32], strides = [1, 1]} : vector<8x128xf32> to vector<8x32xf32>
    %287 = vector.extract_strided_slice %285 {offsets = [0, 32], sizes = [8, 32], strides = [1, 1]} : vector<8x128xf32> to vector<8x32xf32>
    %288 = vector.extract_strided_slice %285 {offsets = [0, 64], sizes = [8, 32], strides = [1, 1]} : vector<8x128xf32> to vector<8x32xf32>
    %289 = vector.extract_strided_slice %285 {offsets = [0, 96], sizes = [8, 32], strides = [1, 1]} : vector<8x128xf32> to vector<8x32xf32>
    %290 = arith.mulf %287, %276 : vector<8x32xf32>
    %291 = arith.mulf %286, %289 : vector<8x32xf32>
    %292 = arith.addf %290, %291 : vector<8x32xf32>
    %293 = math.tanh %292 : vector<8x32xf32>
    %294 = arith.mulf %288, %293 : vector<8x32xf32>
    %295 = tpu.concatenate %154, %294 in 0 : vector<8x32xf32>, vector<8x32xf32> -> vector<16x32xf32>
    %c0_85 = arith.constant 0 : index
    %c0_86 = arith.constant 0 : index
    %296 = vector.load %arg7[%c0_85, %c0_86] : memref<32x128xbf16, #tpu.memory_space<vmem>>, vector<32x128xbf16>
    %c0_87 = arith.constant 0 : index
    %c0_88 = arith.constant 0 : index
    %297 = vector.load %arg8[%c0_87, %c0_88] : memref<1x128xf32, #tpu.memory_space<vmem>>, vector<1x128xf32>
    %c0_89 = arith.constant 0 : index
    %c0_90 = arith.constant 0 : index
    %298 = vector.load %arg9[%c0_89, %c0_90] : memref<128x128xbf16, #tpu.memory_space<vmem>>, vector<128x128xbf16>
    %c0_91 = arith.constant 0 : index
    %c0_92 = arith.constant 0 : index
    %299 = vector.load %arg10[%c0_91, %c0_92] : memref<1x128xf32, #tpu.memory_space<vmem>>, vector<1x128xf32>
    %c0_93 = arith.constant 0 : index
    %c0_94 = arith.constant 0 : index
    %300 = vector.load %arg11[%c0_93, %c0_94] : memref<128x128xbf16, #tpu.memory_space<vmem>>, vector<128x128xbf16>
    %c0_95 = arith.constant 0 : index
    %c0_96 = arith.constant 0 : index
    %301 = vector.load %arg12[%c0_95, %c0_96] : memref<1x128xf32, #tpu.memory_space<vmem>>, vector<1x128xf32>
    %c0_97 = arith.constant 0 : index
    %c0_98 = arith.constant 0 : index
    %302 = vector.load %arg13[%c0_97, %c0_98] : memref<128x128xbf16, #tpu.memory_space<vmem>>, vector<128x128xbf16>
    %c0_99 = arith.constant 0 : index
    %c0_100 = arith.constant 0 : index
    %303 = vector.load %arg14[%c0_99, %c0_100] : memref<1x128xf32, #tpu.memory_space<vmem>>, vector<1x128xf32>
    %304 = arith.truncf %295 : vector<16x32xf32> to vector<16x32xbf16>
    %cst_101 = arith.constant dense<0.000000e+00> : vector<16x128xf32>
    %305 = tpu.matmul %304, %296, %cst_101 {dimension_numbers = #tpu.dot_dimension_numbers<[1], [0], [0], [1], [0, 0, 1, 1], [], []>} : vector<16x32xbf16>, vector<32x128xbf16>, vector<16x128xf32> -> vector<16x128xf32>
    %306 = vector.broadcast %297 : vector<1x128xf32> to vector<16x128xf32>
    %307 = arith.addf %305, %306 : vector<16x128xf32>
    %cst_102 = arith.constant 0.000000e+00 : f32
    %308 = vector.broadcast %cst_102 : f32 to vector<16x128xf32>
    %309 = arith.maximumf %307, %308 : vector<16x128xf32>
    %310 = arith.truncf %309 : vector<16x128xf32> to vector<16x128xbf16>
    %cst_103 = arith.constant dense<0.000000e+00> : vector<16x128xf32>
    %311 = tpu.matmul %310, %298, %cst_103 {dimension_numbers = #tpu.dot_dimension_numbers<[1], [0], [0], [1], [0, 0, 1, 1], [], []>} : vector<16x128xbf16>, vector<128x128xbf16>, vector<16x128xf32> -> vector<16x128xf32>
    %312 = vector.broadcast %299 : vector<1x128xf32> to vector<16x128xf32>
    %313 = arith.addf %311, %312 : vector<16x128xf32>
    %cst_104 = arith.constant 0.000000e+00 : f32
    %314 = vector.broadcast %cst_104 : f32 to vector<16x128xf32>
    %315 = arith.maximumf %313, %314 : vector<16x128xf32>
    %316 = arith.truncf %315 : vector<16x128xf32> to vector<16x128xbf16>
    %cst_105 = arith.constant dense<0.000000e+00> : vector<16x128xf32>
    %317 = tpu.matmul %316, %300, %cst_105 {dimension_numbers = #tpu.dot_dimension_numbers<[1], [0], [0], [1], [0, 0, 1, 1], [], []>} : vector<16x128xbf16>, vector<128x128xbf16>, vector<16x128xf32> -> vector<16x128xf32>
    %318 = vector.broadcast %301 : vector<1x128xf32> to vector<16x128xf32>
    %319 = arith.addf %317, %318 : vector<16x128xf32>
    %cst_106 = arith.constant 0.000000e+00 : f32
    %320 = vector.broadcast %cst_106 : f32 to vector<16x128xf32>
    %321 = arith.maximumf %319, %320 : vector<16x128xf32>
    %322 = arith.truncf %321 : vector<16x128xf32> to vector<16x128xbf16>
    %cst_107 = arith.constant dense<0.000000e+00> : vector<16x128xf32>
    %323 = tpu.matmul %322, %302, %cst_107 {dimension_numbers = #tpu.dot_dimension_numbers<[1], [0], [0], [1], [0, 0, 1, 1], [], []>} : vector<16x128xbf16>, vector<128x128xbf16>, vector<16x128xf32> -> vector<16x128xf32>
    %324 = vector.broadcast %303 : vector<1x128xf32> to vector<16x128xf32>
    %325 = arith.addf %323, %324 : vector<16x128xf32>
    %c0_108 = arith.constant 0 : index
    %c0_109 = arith.constant 0 : index
    %326 = vector.load %arg15[%c0_108, %c0_109] : memref<16x128xf32, #tpu.memory_space<vmem>>, vector<16x128xf32>
    tpu.vector_store %arg15[%c0_108, %c0_109], %325 {strides = array<i32>} : memref<16x128xf32, #tpu.memory_space<vmem>>, vector<16x128xf32>,
    return
  }
}

</mosaic_0001>

<llo_original>
// kernel: rnn_model_forward.1
$region0: #{rnn_model_forward.1}
  #allocation0 [shape = 'u32[]', space=smem, size = 0x4, offset = 0x4, fixed_abs, tag = 'smem constant byte address 0x4 - core index']
  #allocation1 [shape = 'u32[144,128]{1,0:T(1,128)}', space=vmem, size = 0x12000, scoped, tag = 'internal scratch']
  #allocation2 [shape = 'f32[64,128]{1,0:T(8,128)}', space=vmem, size = 0x8000, scoped, tag = 'scratch operand']
  #allocation3 [shape = 'f32[64,32]{1,0:T(8,128)}', space=vmem, size = 0x8000, scoped, tag = 'scratch operand']
  %s0 = inlined_call_operand.vmem [shape: f32[64,9], index: 0, kind: input, shape index: {}]
  %s1 = inlined_call_operand.vmem [shape: bf16[9,128], index: 1, kind: input, shape index: {}]
  %s2 = inlined_call_operand.vmem [shape: bf16[32,128], index: 2, kind: input, shape index: {}]
  %s3 = inlined_call_operand.vmem [shape: f32[1,128], index: 3, kind: input, shape index: {}]
  %s4 = inlined_call_operand.vmem [shape: bf16[32,128], index: 4, kind: input, shape index: {}]
  %s5 = inlined_call_operand.vmem [shape: bf16[32,128], index: 5, kind: input, shape index: {}]
  %s6 = inlined_call_operand.vmem [shape: f32[1,128], index: 6, kind: input, shape index: {}]
  %s7 = inlined_call_operand.vmem [shape: bf16[32,128], index: 7, kind: input, shape index: {}]
  %s8 = inlined_call_operand.vmem [shape: f32[1,128], index: 8, kind: input, shape index: {}]
  %s9 = inlined_call_operand.vmem [shape: bf16[128,128], index: 9, kind: input, shape index: {}]
  %s10 = inlined_call_operand.vmem [shape: f32[1,128], index: 10, kind: input, shape index: {}]
  %s11 = inlined_call_operand.vmem [shape: bf16[128,128], index: 11, kind: input, shape index: {}]
  %s12 = inlined_call_operand.vmem [shape: f32[1,128], index: 12, kind: input, shape index: {}]
  %s13 = inlined_call_operand.vmem [shape: bf16[128,128], index: 13, kind: input, shape index: {}]
  %s14 = inlined_call_operand.vmem [shape: f32[1,128], index: 14, kind: input, shape index: {}]
  %s15 = inlined_call_operand.vmem [shape: f32[16,128], index: 15, kind: output, shape index: {}]
  %s16 = sld [smem:[#allocation0]]
  $region70: #{rnn_model_forward.1} parent=0
    _
  %s18 = ssub.s32 1, %s16
  %s19 = scalar_select 0, %s18, %s16
  // Predicated region
  $region2: #{rnn_model_forward.1} parent=0 // pred_check
    _
  $region3: #{rnn_model_forward.1} parent=0 // pred_check_branch
    %21 = sbr.rel (0) target = $region5
  $region4: #{rnn_model_forward.1} parent=0 // pred_region
    _
  $region5: #{rnn_model_forward.1} parent=0 // pred_fallthru
    _
  // Predicated region
  $region6: #{rnn_model_forward.1} parent=0 // pred_check
    _
  $region7: #{rnn_model_forward.1} parent=0 // pred_check_branch
    %23 = sbr.rel (0) target = $region9
  $region8: #{rnn_model_forward.1} parent=0 // pred_region
    _
  $region9: #{rnn_model_forward.1} parent=0 // pred_fallthru
    _
  // Predicated region
  $region10: #{rnn_model_forward.1} parent=0 // pred_check
    _
  $region11: #{rnn_model_forward.1} parent=0 // pred_check_branch
    %25 = sbr.rel (0) target = $region13
  $region12: #{rnn_model_forward.1} parent=0 // pred_region
    _
  $region13: #{rnn_model_forward.1} parent=0 // pred_fallthru
    _
  // Predicated region
  $region14: #{rnn_model_forward.1} parent=0 // pred_check
    _
  $region15: #{rnn_model_forward.1} parent=0 // pred_check_branch
    %27 = sbr.rel (0) target = $region17
  $region16: #{rnn_model_forward.1} parent=0 // pred_region
    _
  $region17: #{rnn_model_forward.1} parent=0 // pred_fallthru
    _
  // Predicated region
  $region18: #{rnn_model_forward.1} parent=0 // pred_check
    _
  $region19: #{rnn_model_forward.1} parent=0 // pred_check_branch
    %29 = sbr.rel (0) target = $region21
  $region20: #{rnn_model_forward.1} parent=0 // pred_region
    _
  $region21: #{rnn_model_forward.1} parent=0 // pred_fallthru
    _
  // Predicated region
  $region22: #{rnn_model_forward.1} parent=0 // pred_check
    _
  $region23: #{rnn_model_forward.1} parent=0 // pred_check_branch
    %31 = sbr.rel (0) target = $region25
  $region24: #{rnn_model_forward.1} parent=0 // pred_region
    _
  $region25: #{rnn_model_forward.1} parent=0 // pred_fallthru
    _
  // Predicated region
  $region26: #{rnn_model_forward.1} parent=0 // pred_check
    _
  $region27: #{rnn_model_forward.1} parent=0 // pred_check_branch
    %33 = sbr.rel (0) target = $region29
  $region28: #{rnn_model_forward.1} parent=0 // pred_region
    _
  $region29: #{rnn_model_forward.1} parent=0 // pred_fallthru
    _
  // Predicated region
  $region30: #{rnn_model_forward.1} parent=0 // pred_check
    _
  $region31: #{rnn_model_forward.1} parent=0 // pred_check_branch
    %35 = sbr.rel (0) target = $region33
  $region32: #{rnn_model_forward.1} parent=0 // pred_region
    _
  $region33: #{rnn_model_forward.1} parent=0 // pred_fallthru
    _
  // Predicated region
  $region34: #{rnn_model_forward.1} parent=0 // pred_check
    _
  $region35: #{rnn_model_forward.1} parent=0 // pred_check_branch
    %37 = sbr.rel (0) target = $region37
  $region36: #{rnn_model_forward.1} parent=0 // pred_region
    _
  $region37: #{rnn_model_forward.1} parent=0 // pred_fallthru
    _
  // Predicated region
  $region38: #{rnn_model_forward.1} parent=0 // pred_check
    _
  $region39: #{rnn_model_forward.1} parent=0 // pred_check_branch
    %39 = sbr.rel (0) target = $region41
  $region40: #{rnn_model_forward.1} parent=0 // pred_region
    _
  $region41: #{rnn_model_forward.1} parent=0 // pred_fallthru
    _
  // Predicated region
  $region42: #{rnn_model_forward.1} parent=0 // pred_check
    _
  $region43: #{rnn_model_forward.1} parent=0 // pred_check_branch
    %41 = sbr.rel (0) target = $region45
  $region44: #{rnn_model_forward.1} parent=0 // pred_region
    _
  $region45: #{rnn_model_forward.1} parent=0 // pred_fallthru
    _
  // Predicated region
  $region46: #{rnn_model_forward.1} parent=0 // pred_check
    _
  $region47: #{rnn_model_forward.1} parent=0 // pred_check_branch
    %43 = sbr.rel (0) target = $region49
  $region48: #{rnn_model_forward.1} parent=0 // pred_region
    _
  $region49: #{rnn_model_forward.1} parent=0 // pred_fallthru
    _
  // Predicated region
  $region50: #{rnn_model_forward.1} parent=0 // pred_check
    _
  $region51: #{rnn_model_forward.1} parent=0 // pred_check_branch
    %45 = sbr.rel (0) target = $region53
  $region52: #{rnn_model_forward.1} parent=0 // pred_region
    _
  $region53: #{rnn_model_forward.1} parent=0 // pred_fallthru
    _
  // Predicated region
  $region54: #{rnn_model_forward.1} parent=0 // pred_check
    _
  $region55: #{rnn_model_forward.1} parent=0 // pred_check_branch
    %47 = sbr.rel (0) target = $region57
  $region56: #{rnn_model_forward.1} parent=0 // pred_region
    _
  $region57: #{rnn_model_forward.1} parent=0 // pred_fallthru
    _
  // Predicated region
  $region58: #{rnn_model_forward.1} parent=0 // pred_check
    _
  $region59: #{rnn_model_forward.1} parent=0 // pred_check_branch
    %49 = sbr.rel (0) target = $region61
  $region60: #{rnn_model_forward.1} parent=0 // pred_region
    _
  $region61: #{rnn_model_forward.1} parent=0 // pred_fallthru
    _
  %v51 = vlaneseq
  %v52 = vand.u32 %v51, 127
  %vm53 = vcmp.lt.s32.totalorder %v52, 96
  %v54 = vsel %vm53, 0.5, 1.0
  %v55 = vsel %vm53, 0.5, 0.0
  %v56 = vld [vmem:[%s1] sm:$0xf]
  %v57 = vld [vmem:[%s1 + $0x4] sm:$0x1]
  %v58 = vld [vmem:[%s2] sm:$0xf]
  %v59 = vld [vmem:[%s2 + $0x4] sm:$0xf]
  %v60 = vld [vmem:[%s2 + $0x8] sm:$0xf]
  %v61 = vld [vmem:[%s2 + $0xc] sm:$0xf]
  %v62 = vld [vmem:[%s3] sm:$0x1]
  %v63 = vld [vmem:[%s0] sm:$0xff]
  %v64 = vld [vmem:[%s0 + $0x8] sm:$0xff]
  %v65 = vld [vmem:[%s0 + $0x10] sm:$0xff]
  %v66 = vld [vmem:[%s0 + $0x18] sm:$0xff]
  %v67 = vld [vmem:[%s0 + $0x20] sm:$0xff]
  %v68 = vld [vmem:[%s0 + $0x28] sm:$0xff]
  %v69 = vld [vmem:[%s0 + $0x30] sm:$0xff]
  %v70 = vld [vmem:[%s0 + $0x38] sm:$0xff]
  %v71 = vpack.c.bf16 %v64, %v63
  %v72 = vpack.c.bf16 %v66, %v65
  %v73 = vpack.c.bf16 %v68, %v67
  %v74 = vpack.c.bf16 %v70, %v69
  %v76 = vlaneseq
  %v77 = vshrl.u32 %v76, 7
  %v78 = vsub.s32 0, %v77
  %v79 = vrot.slane %v62, %v78
  %v83 = vunpack.c.l.b16 %v56
  %v84 = vunpack.c.l.b16 %v57
  %v85 = vpack.c.b16 %v84, %v83
  %vm86 = vcmask 72704
  %v88 = vsel %vm86, %v71, 0
  %v91 = vsel %vm86, %v72, 0
  %v94 = vsel %vm86, %v73, 0
  %v97 = vsel %vm86, %v74, 0
  %vm99 = vcmask 1043456
  %vm100 = vcmask 1044480
  %v101 = vsel %vm99, 4294967295, 65535
  %v102 = vsel %vm100, %v101, 0
  %v104 = vand.u32 %v85, %v102
  %106 = vmatprep.subr.bf16.mxu0 0
  %107 = vmatpush1.bf16.msra.mxu0 %v104
  %108 = vmatprep.subr.bf16.mxu0 0
  %109 = vmatpush1.bf16.msra.mxu0 0
  %110 = vmatprep.subr.bf16.mxu0 0
  %111 = vmatpush1.bf16.msra.mxu0 0
  %112 = vmatprep.subr.bf16.mxu0 0
  %113 = vmatpush1.bf16.msra.mxu0 0
  %114 = vmatprep.subr.bf16.mxu0 0
  %115 = vmatpush1.bf16.msra.mxu0 0
  %116 = vmatprep.subr.bf16.mxu0 0
  %117 = vmatpush1.bf16.msra.mxu0 0
  %118 = vmatprep.subr.bf16.mxu0 0
  %119 = vmatpush1.bf16.msra.mxu0 0
  %120 = vmatprep.subr.bf16.mxu0 0
  %121 = vmatpush1.bf16.msra.mxu0 0
  %122 = vmatprep.subr.bf16.mxu0 0
  %123 = vmatpush1.bf16.msra.mxu0 0
  %124 = vmatprep.subr.bf16.mxu0 0
  %125 = vmatpush1.bf16.msra.mxu0 0
  %126 = vmatprep.subr.bf16.mxu0 0
  %127 = vmatpush1.bf16.msra.mxu0 0
  %128 = vmatprep.subr.bf16.mxu0 0
  %129 = vmatpush1.bf16.msra.mxu0 0
  %130 = vmatprep.subr.bf16.mxu0 0
  %131 = vmatpush1.bf16.msra.mxu0 0
  %132 = vmatprep.subr.bf16.mxu0 0
  %133 = vmatpush1.bf16.msra.mxu0 0
  %134 = vmatprep.subr.bf16.mxu0 0
  %135 = vmatpush1.bf16.msra.mxu0 0
  %136 = vmatprep.subr.bf16.mxu0 0
  %137 = vmatpush1.bf16.msra.mxu0 0
  %138 = vmatprep.mubr.bf16.mxu0 0
  %139 = vmatmul.mubr.bf16.gmra.mrb[0].mxu0 %v88
  %v140 = vpop.f32.mrb[0].mxu0
  %v141 = vadd.f32 %v79, %v140
  %v142 = vpop.f32.mrb[0].mxu0
  %v143 = vpop.f32.mrb[0].mxu0
  %v144 = vadd.f32 %v79, %v143
  %v145 = vpop.f32.mrb[0].mxu0
  %146 = vmatprep.mubr.bf16.mxu0 0
  %147 = vmatmul.mubr.bf16.gmra.mrb[0].mxu0 %v91
  %v148 = vpop.f32.mrb[0].mxu0
  %v149 = vadd.f32 %v79, %v148
  %v150 = vpop.f32.mrb[0].mxu0
  %v151 = vpop.f32.mrb[0].mxu0
  %v152 = vadd.f32 %v79, %v151
  %v153 = vpop.f32.mrb[0].mxu0
  %154 = vmatprep.mubr.bf16.mxu0 0
  %155 = vmatmul.mubr.bf16.gmra.mrb[0].mxu0 %v94
  %v156 = vpop.f32.mrb[0].mxu0
  %v157 = vadd.f32 %v79, %v156
  %v158 = vpop.f32.mrb[0].mxu0
  %v159 = vpop.f32.mrb[0].mxu0
  %v160 = vadd.f32 %v79, %v159
  %v161 = vpop.f32.mrb[0].mxu0
  %162 = vmatprep.mubr.bf16.mxu0 0
  %163 = vmatmul.mubr.bf16.gmra.mrb[0].mxu0 %v97
  %v164 = vpop.f32.mrb[0].mxu0
  %v165 = vadd.f32 %v79, %v164
  %v166 = vpop.f32.mrb[0].mxu0
  %v167 = vpop.f32.mrb[0].mxu0
  %v168 = vadd.f32 %v79, %v167
  %v169 = vpop.f32.mrb[0].mxu0
  %170 = vdwg.mxu0
  %171 = vst [vmem:[#allocation2] sm:$0xff] %v141
  %172 = vst [vmem:[#allocation2 + $0x8] sm:$0xff] %v144
  %173 = vst [vmem:[#allocation2 + $0x10] sm:$0xff] %v149
  %174 = vst [vmem:[#allocation2 + $0x18] sm:$0xff] %v152
  %175 = vst [vmem:[#allocation2 + $0x20] sm:$0xff] %v157
  %176 = vst [vmem:[#allocation2 + $0x28] sm:$0xff] %v160
  %177 = vst [vmem:[#allocation2 + $0x30] sm:$0xff] %v165
  %178 = vst [vmem:[#allocation2 + $0x38] sm:$0xff] %v168
  %v179 = vld [vmem:[#allocation2] sm:$0xff]
  %v184 = vunpack.c.l.b16 %v58
  %v185 = vunpack.c.l.b16 %v59
  %v186 = vunpack.c.l.b16 %v60
  %v187 = vunpack.c.l.b16 %v61
  %v188 = vpack.c.b16 %v185, %v184
  %v189 = vpack.c.b16 %v187, %v186
  %vm192 = vcmask 261120
  %v194 = vsel %vm192, 0, 0
  %196 = vmatprep.subr.bf16.mxu0 0
  %197 = vmatpush1.bf16.msra.mxu0 %v188
  %198 = vmatprep.subr.bf16.mxu0 0
  %199 = vmatpush1.bf16.msra.mxu0 %v189
  %200 = vmatprep.subr.bf16.mxu0 0
  %201 = vmatpush1.bf16.msra.mxu0 0
  %202 = vmatprep.subr.bf16.mxu0 0
  %203 = vmatpush1.bf16.msra.mxu0 0
  %204 = vmatprep.subr.bf16.mxu0 0
  %205 = vmatpush1.bf16.msra.mxu0 0
  %206 = vmatprep.subr.bf16.mxu0 0
  %207 = vmatpush1.bf16.msra.mxu0 0
  %208 = vmatprep.subr.bf16.mxu0 0
  %209 = vmatpush1.bf16.msra.mxu0 0
  %210 = vmatprep.subr.bf16.mxu0 0
  %211 = vmatpush1.bf16.msra.mxu0 0
  %212 = vmatprep.subr.bf16.mxu0 0
  %213 = vmatpush1.bf16.msra.mxu0 0
  %214 = vmatprep.subr.bf16.mxu0 0
  %215 = vmatpush1.bf16.msra.mxu0 0
  %216 = vmatprep.subr.bf16.mxu0 0
  %217 = vmatpush1.bf16.msra.mxu0 0
  %218 = vmatprep.subr.bf16.mxu0 0
  %219 = vmatpush1.bf16.msra.mxu0 0
  %220 = vmatprep.subr.bf16.mxu0 0
  %221 = vmatpush1.bf16.msra.mxu0 0
  %222 = vmatprep.subr.bf16.mxu0 0
  %223 = vmatpush1.bf16.msra.mxu0 0
  %224 = vmatprep.subr.bf16.mxu0 0
  %225 = vmatpush1.bf16.msra.mxu0 0
  %226 = vmatprep.subr.bf16.mxu0 0
  %227 = vmatpush1.bf16.msra.mxu0 0
  %228 = vmatprep.mubr.bf16.mxu0 0
  %229 = vmatmul.mubr.bf16.gmra.mrb[0].mxu0 %v194
  %v230 = vpop.f32.mrb[0].mxu0
  %v231 = vadd.f32 0.0, %v230
  %v232 = vpop.f32.mrb[0].mxu0
  %v233 = vpop.f32.mrb[0].mxu0
  %v234 = vpop.f32.mrb[0].mxu0
  %235 = vdwg.mxu0
  %v236 = vadd.f32 %v179, %v231
  %v237 = vtanh.pop %v236
  %v238 = vmul.f32 %v237, %v54
  %v239 = vadd.f32 %v238, %v55
  %v240 = vmul.f32 %v239, 0.0
  %242 = vrot.lane.b32.xlu0 %v239, 32
  %v243 = vpop.permute.xlu0 %242
  %v245 = vmul.f32 %v239, %v243
  %247 = vrot.lane.b32.xlu0 %v245, 32
  %v248 = vpop.permute.xlu0 %247
  %v250 = vadd.f32 %v240, %v248
  %v251 = vtanh.pop %v250
  %253 = vrot.lane.b32.xlu0 %v251, 32
  %v254 = vpop.permute.xlu0 %253
  %v256 = vmul.f32 %v239, %v254
  %258 = vrot.lane.b32.xlu0 %v256, 64
  %v259 = vpop.permute.xlu0 %258
  %261 = vst.msk [vmem:[#allocation3] sm:$0xff] %vm192, %v259
  %v262 = vld [vmem:[#allocation2 + $0x8] sm:$0xff]
  %v263 = vpack.c.bf16 %v256, %v256
  %265 = vrot.lane.b32.xlu0 %v263, 64
  %v266 = vpop.permute.xlu0 %265
  %v268 = vsel %vm192, %v266, 0
  %270 = vmatprep.subr.bf16.mxu0 0
  %271 = vmatpush1.bf16.msra.mxu0 %v188
  %272 = vmatprep.subr.bf16.mxu0 0
  %273 = vmatpush1.bf16.msra.mxu0 %v189
  %274 = vmatprep.subr.bf16.mxu0 0
  %275 = vmatpush1.bf16.msra.mxu0 0
  %276 = vmatprep.subr.bf16.mxu0 0
  %277 = vmatpush1.bf16.msra.mxu0 0
  %278 = vmatprep.subr.bf16.mxu0 0
  %279 = vmatpush1.bf16.msra.mxu0 0
  %280 = vmatprep.subr.bf16.mxu0 0
  %281 = vmatpush1.bf16.msra.mxu0 0
  %282 = vmatprep.subr.bf16.mxu0 0
  %283 = vmatpush1.bf16.msra.mxu0 0
  %284 = vmatprep.subr.bf16.mxu0 0
  %285 = vmatpush1.bf16.msra.mxu0 0
  %286 = vmatprep.subr.bf16.mxu0 0
  %287 = vmatpush1.bf16.msra.mxu0 0
  %288 = vmatprep.subr.bf16.mxu0 0
  %289 = vmatpush1.bf16.msra.mxu0 0
  %290 = vmatprep.subr.bf16.mxu0 0
  %291 = vmatpush1.bf16.msra.mxu0 0
  %292 = vmatprep.subr.bf16.mxu0 0
  %293 = vmatpush1.bf16.msra.mxu0 0
  %294 = vmatprep.subr.bf16.mxu0 0
  %295 = vmatpush1.bf16.msra.mxu0 0
  %296 = vmatprep.subr.bf16.mxu0 0
  %297 = vmatpush1.bf16.msra.mxu0 0
  %298 = vmatprep.subr.bf16.mxu0 0
  %299 = vmatpush1.bf16.msra.mxu0 0
  %300 = vmatprep.subr.bf16.mxu0 0
  %301 = vmatpush1.bf16.msra.mxu0 0
  %302 = vmatprep.mubr.bf16.mxu0 0
  %303 = vmatmul.mubr.bf16.gmra.mrb[0].mxu0 %v268
  %v304 = vpop.f32.mrb[0].mxu0
  %v305 = vadd.f32 0.0, %v304
  %v306 = vpop.f32.mrb[0].mxu0
  %v307 = vpop.f32.mrb[0].mxu0
  %v308 = vpop.f32.mrb[0].mxu0
  %309 = vdwg.mxu0
  %v310 = vadd.f32 %v262, %v305
  %v311 = vtanh.pop %v310
  %v312 = vmul.f32 %v311, %v54
  %v313 = vadd.f32 %v312, %v55
  %v314 = vmul.f32 %v313, %v250
  %316 = vrot.lane.b32.xlu0 %v313, 32
  %v317 = vpop.permute.xlu0 %316
  %v319 = vmul.f32 %v313, %v317
  %321 = vrot.lane.b32.xlu0 %v319, 32
  %v322 = vpop.permute.xlu0 %321
  %v324 = vadd.f32 %v314, %v322
  %v325 = vtanh.pop %v324
  %327 = vrot.lane.b32.xlu0 %v325, 32
  %v328 = vpop.permute.xlu0 %327
  %v330 = vmul.f32 %v313, %v328
  %332 = vrot.lane.b32.xlu0 %v330, 64
  %v333 = vpop.permute.xlu0 %332
  %335 = vst.msk [vmem:[#allocation3 + $0x8] sm:$0xff] %vm192, %v333
  %v336 = vld [vmem:[#allocation2 + $0x10] sm:$0xff]
  %v337 = vpack.c.bf16 %v330, %v330
  %339 = vrot.lane.b32.xlu0 %v337, 64
  %v340 = vpop.permute.xlu0 %339
  %v342 = vsel %vm192, %v340, 0
  %344 = vmatprep.subr.bf16.mxu0 0
  %345 = vmatpush1.bf16.msra.mxu0 %v188
  %346 = vmatprep.subr.bf16.mxu0 0
  %347 = vmatpush1.bf16.msra.mxu0 %v189
  %348 = vmatprep.subr.bf16.mxu0 0
  %349 = vmatpush1.bf16.msra.mxu0 0
  %350 = vmatprep.subr.bf16.mxu0 0
  %351 = vmatpush1.bf16.msra.mxu0 0
  %352 = vmatprep.subr.bf16.mxu0 0
  %353 = vmatpush1.bf16.msra.mxu0 0
  %354 = vmatprep.subr.bf16.mxu0 0
  %355 = vmatpush1.bf16.msra.mxu0 0
  %356 = vmatprep.subr.bf16.mxu0 0
  %357 = vmatpush1.bf16.msra.mxu0 0
  %358 = vmatprep.subr.bf16.mxu0 0
  %359 = vmatpush1.bf16.msra.mxu0 0
  %360 = vmatprep.subr.bf16.mxu0 0
  %361 = vmatpush1.bf16.msra.mxu0 0
  %362 = vmatprep.subr.bf16.mxu0 0
  %363 = vmatpush1.bf16.msra.mxu0 0
  %364 = vmatprep.subr.bf16.mxu0 0
  %365 = vmatpush1.bf16.msra.mxu0 0
  %366 = vmatprep.subr.bf16.mxu0 0
  %367 = vmatpush1.bf16.msra.mxu0 0
  %368 = vmatprep.subr.bf16.mxu0 0
  %369 = vmatpush1.bf16.msra.mxu0 0
  %370 = vmatprep.subr.bf16.mxu0 0
  %371 = vmatpush1.bf16.msra.mxu0 0
  %372 = vmatprep.subr.bf16.mxu0 0
  %373 = vmatpush1.bf16.msra.mxu0 0
  %374 = vmatprep.subr.bf16.mxu0 0
  %375 = vmatpush1.bf16.msra.mxu0 0
  %376 = vmatprep.mubr.bf16.mxu0 0
  %377 = vmatmul.mubr.bf16.gmra.mrb[0].mxu0 %v342
  %v378 = vpop.f32.mrb[0].mxu0
  %v379 = vadd.f32 0.0, %v378
  %v380 = vpop.f32.mrb[0].mxu0
  %v381 = vpop.f32.mrb[0].mxu0
  %v382 = vpop.f32.mrb[0].mxu0
  %383 = vdwg.mxu0
  %v384 = vadd.f32 %v336, %v379
  %v385 = vtanh.pop %v384
  %v386 = vmul.f32 %v385, %v54
  %v387 = vadd.f32 %v386, %v55
  %v388 = vmul.f32 %v387, %v324
  %390 = vrot.lane.b32.xlu0 %v387, 32
  %v391 = vpop.permute.xlu0 %390
  %v393 = vmul.f32 %v387, %v391
  %395 = vrot.lane.b32.xlu0 %v393, 32
  %v396 = vpop.permute.xlu0 %395
  %v398 = vadd.f32 %v388, %v396
  %v399 = vtanh.pop %v398
  %401 = vrot.lane.b32.xlu0 %v399, 32
  %v402 = vpop.permute.xlu0 %401
  %v404 = vmul.f32 %v387, %v402
  %406 = vrot.lane.b32.xlu0 %v404, 64
  %v407 = vpop.permute.xlu0 %406
  %409 = vst.msk [vmem:[#allocation3 + $0x10] sm:$0xff] %vm192, %v407
  %v410 = vld [vmem:[#allocation2 + $0x18] sm:$0xff]
  %v411 = vpack.c.bf16 %v404, %v404
  %413 = vrot.lane.b32.xlu0 %v411, 64
  %v414 = vpop.permute.xlu0 %413
  %v416 = vsel %vm192, %v414, 0
  %418 = vmatprep.subr.bf16.mxu0 0
  %419 = vmatpush1.bf16.msra.mxu0 %v188
  %420 = vmatprep.subr.bf16.mxu0 0
  %421 = vmatpush1.bf16.msra.mxu0 %v189
  %422 = vmatprep.subr.bf16.mxu0 0
  %423 = vmatpush1.bf16.msra.mxu0 0
  %424 = vmatprep.subr.bf16.mxu0 0
  %425 = vmatpush1.bf16.msra.mxu0 0
  %426 = vmatprep.subr.bf16.mxu0 0
  %427 = vmatpush1.bf16.msra.mxu0 0
  %428 = vmatprep.subr.bf16.mxu0 0
  %429 = vmatpush1.bf16.msra.mxu0 0
  %430 = vmatprep.subr.bf16.mxu0 0
  %431 = vmatpush1.bf16.msra.mxu0 0
  %432 = vmatprep.subr.bf16.mxu0 0
  %433 = vmatpush1.bf16.msra.mxu0 0
  %434 = vmatprep.subr.bf16.mxu0 0
  %435 = vmatpush1.bf16.msra.mxu0 0
  %436 = vmatprep.subr.bf16.mxu0 0
  %437 = vmatpush1.bf16.msra.mxu0 0
  %438 = vmatprep.subr.bf16.mxu0 0
  %439 = vmatpush1.bf16.msra.mxu0 0
  %440 = vmatprep.subr.bf16.mxu0 0
  %441 = vmatpush1.bf16.msra.mxu0 0
  %442 = vmatprep.subr.bf16.mxu0 0
  %443 = vmatpush1.bf16.msra.mxu0 0
  %444 = vmatprep.subr.bf16.mxu0 0
  %445 = vmatpush1.bf16.msra.mxu0 0
  %446 = vmatprep.subr.bf16.mxu0 0
  %447 = vmatpush1.bf16.msra.mxu0 0
  %448 = vmatprep.subr.bf16.mxu0 0
  %449 = vmatpush1.bf16.msra.mxu0 0
  %450 = vmatprep.mubr.bf16.mxu0 0
  %451 = vmatmul.mubr.bf16.gmra.mrb[0].mxu0 %v416
  %v452 = vpop.f32.mrb[0].mxu0
  %v453 = vadd.f32 0.0, %v452
  %v454 = vpop.f32.mrb[0].mxu0
  %v455 = vpop.f32.mrb[0].mxu0
  %v456 = vpop.f32.mrb[0].mxu0
  %457 = vdwg.mxu0
  %v458 = vadd.f32 %v410, %v453
  %v459 = vtanh.pop %v458
  %v460 = vmul.f32 %v459, %v54
  %v461 = vadd.f32 %v460, %v55
  %v462 = vmul.f32 %v461, %v398
  %464 = vrot.lane.b32.xlu0 %v461, 32
  %v465 = vpop.permute.xlu0 %464
  %v467 = vmul.f32 %v461, %v465
  %469 = vrot.lane.b32.xlu0 %v467, 32
  %v470 = vpop.permute.xlu0 %469
  %v472 = vadd.f32 %v462, %v470
  %v473 = vtanh.pop %v472
  %475 = vrot.lane.b32.xlu0 %v473, 32
  %v476 = vpop.permute.xlu0 %475
  %v478 = vmul.f32 %v461, %v476
  %480 = vrot.lane.b32.xlu0 %v478, 64
  %v481 = vpop.permute.xlu0 %480
  %483 = vst.msk [vmem:[#allocation3 + $0x18] sm:$0xff] %vm192, %v481
  %v484 = vld [vmem:[#allocation2 + $0x20] sm:$0xff]
  %v485 = vpack.c.bf16 %v478, %v478
  %487 = vrot.lane.b32.xlu0 %v485, 64
  %v488 = vpop.permute.xlu0 %487
  %v490 = vsel %vm192, %v488, 0
  %492 = vmatprep.subr.bf16.mxu0 0
  %493 = vmatpush1.bf16.msra.mxu0 %v188
  %494 = vmatprep.subr.bf16.mxu0 0
  %495 = vmatpush1.bf16.msra.mxu0 %v189
  %496 = vmatprep.subr.bf16.mxu0 0
  %497 = vmatpush1.bf16.msra.mxu0 0
  %498 = vmatprep.subr.bf16.mxu0 0
  %499 = vmatpush1.bf16.msra.mxu0 0
  %500 = vmatprep.subr.bf16.mxu0 0
  %501 = vmatpush1.bf16.msra.mxu0 0
  %502 = vmatprep.subr.bf16.mxu0 0
  %503 = vmatpush1.bf16.msra.mxu0 0
  %504 = vmatprep.subr.bf16.mxu0 0
  %505 = vmatpush1.bf16.msra.mxu0 0
  %506 = vmatprep.subr.bf16.mxu0 0
  %507 = vmatpush1.bf16.msra.mxu0 0
  %508 = vmatprep.subr.bf16.mxu0 0
  %509 = vmatpush1.bf16.msra.mxu0 0
  %510 = vmatprep.subr.bf16.mxu0 0
  %511 = vmatpush1.bf16.msra.mxu0 0
  %512 = vmatprep.subr.bf16.mxu0 0
  %513 = vmatpush1.bf16.msra.mxu0 0
  %514 = vmatprep.subr.bf16.mxu0 0
  %515 = vmatpush1.bf16.msra.mxu0 0
  %516 = vmatprep.subr.bf16.mxu0 0
  %517 = vmatpush1.bf16.msra.mxu0 0
  %518 = vmatprep.subr.bf16.mxu0 0
  %519 = vmatpush1.bf16.msra.mxu0 0
  %520 = vmatprep.subr.bf16.mxu0 0
  %521 = vmatpush1.bf16.msra.mxu0 0
  %522 = vmatprep.subr.bf16.mxu0 0
  %523 = vmatpush1.bf16.msra.mxu0 0
  %524 = vmatprep.mubr.bf16.mxu0 0
  %525 = vmatmul.mubr.bf16.gmra.mrb[0].mxu0 %v490
  %v526 = vpop.f32.mrb[0].mxu0
  %v527 = vadd.f32 0.0, %v526
  %v528 = vpop.f32.mrb[0].mxu0
  %v529 = vpop.f32.mrb[0].mxu0
  %v530 = vpop.f32.mrb[0].mxu0
  %531 = vdwg.mxu0
  %v532 = vadd.f32 %v484, %v527
  %v533 = vtanh.pop %v532
  %v534 = vmul.f32 %v533, %v54
  %v535 = vadd.f32 %v534, %v55
  %v536 = vmul.f32 %v535, %v472
  %538 = vrot.lane.b32.xlu0 %v535, 32
  %v539 = vpop.permute.xlu0 %538
  %v541 = vmul.f32 %v535, %v539
  %543 = vrot.lane.b32.xlu0 %v541, 32
  %v544 = vpop.permute.xlu0 %543
  %v546 = vadd.f32 %v536, %v544
  %v547 = vtanh.pop %v546
  %549 = vrot.lane.b32.xlu0 %v547, 32
  %v550 = vpop.permute.xlu0 %549
  %v552 = vmul.f32 %v535, %v550
  %554 = vrot.lane.b32.xlu0 %v552, 64
  %v555 = vpop.permute.xlu0 %554
  %557 = vst.msk [vmem:[#allocation3 + $0x20] sm:$0xff] %vm192, %v555
  %v558 = vld [vmem:[#allocation2 + $0x28] sm:$0xff]
  %v559 = vpack.c.bf16 %v552, %v552
  %561 = vrot.lane.b32.xlu0 %v559, 64
  %v562 = vpop.permute.xlu0 %561
  %v564 = vsel %vm192, %v562, 0
  %566 = vmatprep.subr.bf16.mxu0 0
  %567 = vmatpush1.bf16.msra.mxu0 %v188
  %568 = vmatprep.subr.bf16.mxu0 0
  %569 = vmatpush1.bf16.msra.mxu0 %v189
  %570 = vmatprep.subr.bf16.mxu0 0
  %571 = vmatpush1.bf16.msra.mxu0 0
  %572 = vmatprep.subr.bf16.mxu0 0
  %573 = vmatpush1.bf16.msra.mxu0 0
  %574 = vmatprep.subr.bf16.mxu0 0
  %575 = vmatpush1.bf16.msra.mxu0 0
  %576 = vmatprep.subr.bf16.mxu0 0
  %577 = vmatpush1.bf16.msra.mxu0 0
  %578 = vmatprep.subr.bf16.mxu0 0
  %579 = vmatpush1.bf16.msra.mxu0 0
  %580 = vmatprep.subr.bf16.mxu0 0
  %581 = vmatpush1.bf16.msra.mxu0 0
  %582 = vmatprep.subr.bf16.mxu0 0
  %583 = vmatpush1.bf16.msra.mxu0 0
  %584 = vmatprep.subr.bf16.mxu0 0
  %585 = vmatpush1.bf16.msra.mxu0 0
  %586 = vmatprep.subr.bf16.mxu0 0
  %587 = vmatpush1.bf16.msra.mxu0 0
  %588 = vmatprep.subr.bf16.mxu0 0
  %589 = vmatpush1.bf16.msra.mxu0 0
  %590 = vmatprep.subr.bf16.mxu0 0
  %591 = vmatpush1.bf16.msra.mxu0 0
  %592 = vmatprep.subr.bf16.mxu0 0
  %593 = vmatpush1.bf16.msra.mxu0 0
  %594 = vmatprep.subr.bf16.mxu0 0
  %595 = vmatpush1.bf16.msra.mxu0 0
  %596 = vmatprep.subr.bf16.mxu0 0
  %597 = vmatpush1.bf16.msra.mxu0 0
  %598 = vmatprep.mubr.bf16.mxu0 0
  %599 = vmatmul.mubr.bf16.gmra.mrb[0].mxu0 %v564
  %v600 = vpop.f32.mrb[0].mxu0
  %v601 = vadd.f32 0.0, %v600
  %v602 = vpop.f32.mrb[0].mxu0
  %v603 = vpop.f32.mrb[0].mxu0
  %v604 = vpop.f32.mrb[0].mxu0
  %605 = vdwg.mxu0
  %v606 = vadd.f32 %v558, %v601
  %v607 = vtanh.pop %v606
  %v608 = vmul.f32 %v607, %v54
  %v609 = vadd.f32 %v608, %v55
  %v610 = vmul.f32 %v609, %v546
  %612 = vrot.lane.b32.xlu0 %v609, 32
  %v613 = vpop.permute.xlu0 %612
  %v615 = vmul.f32 %v609, %v613
  %617 = vrot.lane.b32.xlu0 %v615, 32
  %v618 = vpop.permute.xlu0 %617
  %v620 = vadd.f32 %v610, %v618
  %v621 = vtanh.pop %v620
  %623 = vrot.lane.b32.xlu0 %v621, 32
  %v624 = vpop.permute.xlu0 %623
  %v626 = vmul.f32 %v609, %v624
  %628 = vrot.lane.b32.xlu0 %v626, 64
  %v629 = vpop.permute.xlu0 %628
  %631 = vst.msk [vmem:[#allocation3 + $0x28] sm:$0xff] %vm192, %v629
  %v632 = vld [vmem:[#allocation2 + $0x30] sm:$0xff]
  %v633 = vpack.c.bf16 %v626, %v626
  %635 = vrot.lane.b32.xlu0 %v633, 64
  %v636 = vpop.permute.xlu0 %635
  %v638 = vsel %vm192, %v636, 0
  %640 = vmatprep.subr.bf16.mxu0 0
  %641 = vmatpush1.bf16.msra.mxu0 %v188
  %642 = vmatprep.subr.bf16.mxu0 0
  %643 = vmatpush1.bf16.msra.mxu0 %v189
  %644 = vmatprep.subr.bf16.mxu0 0
  %645 = vmatpush1.bf16.msra.mxu0 0
  %646 = vmatprep.subr.bf16.mxu0 0
  %647 = vmatpush1.bf16.msra.mxu0 0
  %648 = vmatprep.subr.bf16.mxu0 0
  %649 = vmatpush1.bf16.msra.mxu0 0
  %650 = vmatprep.subr.bf16.mxu0 0
  %651 = vmatpush1.bf16.msra.mxu0 0
  %652 = vmatprep.subr.bf16.mxu0 0
  %653 = vmatpush1.bf16.msra.mxu0 0
  %654 = vmatprep.subr.bf16.mxu0 0
  %655 = vmatpush1.bf16.msra.mxu0 0
  %656 = vmatprep.subr.bf16.mxu0 0
  %657 = vmatpush1.bf16.msra.mxu0 0
  %658 = vmatprep.subr.bf16.mxu0 0
  %659 = vmatpush1.bf16.msra.mxu0 0
  %660 = vmatprep.subr.bf16.mxu0 0
  %661 = vmatpush1.bf16.msra.mxu0 0
  %662 = vmatprep.subr.bf16.mxu0 0
  %663 = vmatpush1.bf16.msra.mxu0 0
  %664 = vmatprep.subr.bf16.mxu0 0
  %665 = vmatpush1.bf16.msra.mxu0 0
  %666 = vmatprep.subr.bf16.mxu0 0
  %667 = vmatpush1.bf16.msra.mxu0 0
  %668 = vmatprep.subr.bf16.mxu0 0
  %669 = vmatpush1.bf16.msra.mxu0 0
  %670 = vmatprep.subr.bf16.mxu0 0
  %671 = vmatpush1.bf16.msra.mxu0 0
  %672 = vmatprep.mubr.bf16.mxu0 0
  %673 = vmatmul.mubr.bf16.gmra.mrb[0].mxu0 %v638
  %v674 = vpop.f32.mrb[0].mxu0
  %v675 = vadd.f32 0.0, %v674
  %v676 = vpop.f32.mrb[0].mxu0
  %v677 = vpop.f32.mrb[0].mxu0
  %v678 = vpop.f32.mrb[0].mxu0
  %679 = vdwg.mxu0
  %v680 = vadd.f32 %v632, %v675
  %v681 = vtanh.pop %v680
  %v682 = vmul.f32 %v681, %v54
  %v683 = vadd.f32 %v682, %v55
  %v684 = vmul.f32 %v683, %v620
  %686 = vrot.lane.b32.xlu0 %v683, 32
  %v687 = vpop.permute.xlu0 %686
  %v689 = vmul.f32 %v683, %v687
  %691 = vrot.lane.b32.xlu0 %v689, 32
  %v692 = vpop.permute.xlu0 %691
  %v694 = vadd.f32 %v684, %v692
  %v695 = vtanh.pop %v694
  %697 = vrot.lane.b32.xlu0 %v695, 32
  %v698 = vpop.permute.xlu0 %697
  %v700 = vmul.f32 %v683, %v698
  %702 = vrot.lane.b32.xlu0 %v700, 64
  %v703 = vpop.permute.xlu0 %702
  %705 = vst.msk [vmem:[#allocation3 + $0x30] sm:$0xff] %vm192, %v703
  %v706 = vld [vmem:[#allocation2 + $0x38] sm:$0xff]
  %v707 = vpack.c.bf16 %v700, %v700
  %709 = vrot.lane.b32.xlu0 %v707, 64
  %v710 = vpop.permute.xlu0 %709
  %v712 = vsel %vm192, %v710, 0
  %714 = vmatprep.subr.bf16.mxu0 0
  %715 = vmatpush1.bf16.msra.mxu0 %v188
  %716 = vmatprep.subr.bf16.mxu0 0
  %717 = vmatpush1.bf16.msra.mxu0 %v189
  %718 = vmatprep.subr.bf16.mxu0 0
  %719 = vmatpush1.bf16.msra.mxu0 0
  %720 = vmatprep.subr.bf16.mxu0 0
  %721 = vmatpush1.bf16.msra.mxu0 0
  %722 = vmatprep.subr.bf16.mxu0 0
  %723 = vmatpush1.bf16.msra.mxu0 0
  %724 = vmatprep.subr.bf16.mxu0 0
  %725 = vmatpush1.bf16.msra.mxu0 0
  %726 = vmatprep.subr.bf16.mxu0 0
  %727 = vmatpush1.bf16.msra.mxu0 0
  %728 = vmatprep.subr.bf16.mxu0 0
  %729 = vmatpush1.bf16.msra.mxu0 0
  %730 = vmatprep.subr.bf16.mxu0 0
  %731 = vmatpush1.bf16.msra.mxu0 0
  %732 = vmatprep.subr.bf16.mxu0 0
  %733 = vmatpush1.bf16.msra.mxu0 0
  %734 = vmatprep.subr.bf16.mxu0 0
  %735 = vmatpush1.bf16.msra.mxu0 0
  %736 = vmatprep.subr.bf16.mxu0 0
  %737 = vmatpush1.bf16.msra.mxu0 0
  %738 = vmatprep.subr.bf16.mxu0 0
  %739 = vmatpush1.bf16.msra.mxu0 0
  %740 = vmatprep.subr.bf16.mxu0 0
  %741 = vmatpush1.bf16.msra.mxu0 0
  %742 = vmatprep.subr.bf16.mxu0 0
  %743 = vmatpush1.bf16.msra.mxu0 0
  %744 = vmatprep.subr.bf16.mxu0 0
  %745 = vmatpush1.bf16.msra.mxu0 0
  %746 = vmatprep.mubr.bf16.mxu0 0
  %747 = vmatmul.mubr.bf16.gmra.mrb[0].mxu0 %v712
  %v748 = vpop.f32.mrb[0].mxu0
  %v749 = vadd.f32 0.0, %v748
  %v750 = vpop.f32.mrb[0].mxu0
  %v751 = vpop.f32.mrb[0].mxu0
  %v752 = vpop.f32.mrb[0].mxu0
  %753 = vdwg.mxu0
  %v754 = vadd.f32 %v706, %v749
  %v755 = vtanh.pop %v754
  %v756 = vmul.f32 %v755, %v54
  %v757 = vadd.f32 %v756, %v55
  %v758 = vmul.f32 %v757, %v694
  %760 = vrot.lane.b32.xlu0 %v757, 32
  %v761 = vpop.permute.xlu0 %760
  %v763 = vmul.f32 %v757, %v761
  %765 = vrot.lane.b32.xlu0 %v763, 32
  %v766 = vpop.permute.xlu0 %765
  %v768 = vadd.f32 %v758, %v766
  %v769 = vtanh.pop %v768
  %771 = vrot.lane.b32.xlu0 %v769, 32
  %v772 = vpop.permute.xlu0 %771
  %v774 = vmul.f32 %v757, %v772
  %776 = vrot.lane.b32.xlu0 %v774, 64
  %v777 = vpop.permute.xlu0 %776
  %779 = vst.msk [vmem:[#allocation3 + $0x38] sm:$0xff] %vm192, %v777
  %v780 = vld [vmem:[%s4] sm:$0xf]
  %v781 = vld [vmem:[%s4 + $0x4] sm:$0xf]
  %v782 = vld [vmem:[%s4 + $0x8] sm:$0xf]
  %v783 = vld [vmem:[%s4 + $0xc] sm:$0xf]
  %v784 = vld [vmem:[%s5] sm:$0xf]
  %v785 = vld [vmem:[%s5 + $0x4] sm:$0xf]
  %v786 = vld [vmem:[%s5 + $0x8] sm:$0xf]
  %v787 = vld [vmem:[%s5 + $0xc] sm:$0xf]
  %v788 = vld [vmem:[%s6] sm:$0x1]
  %v789 = vld [vmem:[#allocation3] sm:$0xff]
  %v790 = vld [vmem:[#allocation3 + $0x8] sm:$0xff]
  %v791 = vld [vmem:[#allocation3 + $0x10] sm:$0xff]
  %v792 = vld [vmem:[#allocation3 + $0x18] sm:$0xff]
  %v793 = vld [vmem:[#allocation3 + $0x20] sm:$0xff]
  %v794 = vld [vmem:[#allocation3 + $0x28] sm:$0xff]
  %v795 = vld [vmem:[#allocation3 + $0x30] sm:$0xff]
  %v796 = vld [vmem:[#allocation3 + $0x38] sm:$0xff]
  %v797 = vpack.c.bf16 %v790, %v789
  %v798 = vpack.c.bf16 %v792, %v791
  %v799 = vpack.c.bf16 %v794, %v793
  %v800 = vpack.c.bf16 %v796, %v795
  %v802 = vlaneseq
  %v803 = vshrl.u32 %v802, 7
  %v804 = vsub.s32 0, %v803
  %v805 = vrot.slane %v788, %v804
  %v811 = vunpack.c.l.b16 %v780
  %v812 = vunpack.c.l.b16 %v781
  %v813 = vunpack.c.l.b16 %v782
  %v814 = vunpack.c.l.b16 %v783
  %v815 = vpack.c.b16 %v812, %v811
  %v816 = vpack.c.b16 %v814, %v813
  %v820 = vsel %vm192, %v797, 0
  %v823 = vsel %vm192, %v798, 0
  %v826 = vsel %vm192, %v799, 0
  %v829 = vsel %vm192, %v800, 0
  %831 = vmatprep.subr.bf16.mxu0 0
  %832 = vmatpush1.bf16.msra.mxu0 %v815
  %833 = vmatprep.subr.bf16.mxu0 0
  %834 = vmatpush1.bf16.msra.mxu0 %v816
  %835 = vmatprep.subr.bf16.mxu0 0
  %836 = vmatpush1.bf16.msra.mxu0 0
  %837 = vmatprep.subr.bf16.mxu0 0
  %838 = vmatpush1.bf16.msra.mxu0 0
  %839 = vmatprep.subr.bf16.mxu0 0
  %840 = vmatpush1.bf16.msra.mxu0 0
  %841 = vmatprep.subr.bf16.mxu0 0
  %842 = vmatpush1.bf16.msra.mxu0 0
  %843 = vmatprep.subr.bf16.mxu0 0
  %844 = vmatpush1.bf16.msra.mxu0 0
  %845 = vmatprep.subr.bf16.mxu0 0
  %846 = vmatpush1.bf16.msra.mxu0 0
  %847 = vmatprep.subr.bf16.mxu0 0
  %848 = vmatpush1.bf16.msra.mxu0 0
  %849 = vmatprep.subr.bf16.mxu0 0
  %850 = vmatpush1.bf16.msra.mxu0 0
  %851 = vmatprep.subr.bf16.mxu0 0
  %852 = vmatpush1.bf16.msra.mxu0 0
  %853 = vmatprep.subr.bf16.mxu0 0
  %854 = vmatpush1.bf16.msra.mxu0 0
  %855 = vmatprep.subr.bf16.mxu0 0
  %856 = vmatpush1.bf16.msra.mxu0 0
  %857 = vmatprep.subr.bf16.mxu0 0
  %858 = vmatpush1.bf16.msra.mxu0 0
  %859 = vmatprep.subr.bf16.mxu0 0
  %860 = vmatpush1.bf16.msra.mxu0 0
  %861 = vmatprep.subr.bf16.mxu0 0
  %862 = vmatpush1.bf16.msra.mxu0 0
  %863 = vmatprep.mubr.bf16.mxu0 0
  %864 = vmatmul.mubr.bf16.gmra.mrb[0].mxu0 %v820
  %v865 = vpop.f32.mrb[0].mxu0
  %v866 = vadd.f32 %v805, %v865
  %v867 = vpop.f32.mrb[0].mxu0
  %v868 = vpop.f32.mrb[0].mxu0
  %v869 = vadd.f32 %v805, %v868
  %v870 = vpop.f32.mrb[0].mxu0
  %871 = vmatprep.mubr.bf16.mxu0 0
  %872 = vmatmul.mubr.bf16.gmra.mrb[0].mxu0 %v823
  %v873 = vpop.f32.mrb[0].mxu0
  %v874 = vadd.f32 %v805, %v873
  %v875 = vpop.f32.mrb[0].mxu0
  %v876 = vpop.f32.mrb[0].mxu0
  %v877 = vadd.f32 %v805, %v876
  %v878 = vpop.f32.mrb[0].mxu0
  %879 = vmatprep.mubr.bf16.mxu0 0
  %880 = vmatmul.mubr.bf16.gmra.mrb[0].mxu0 %v826
  %v881 = vpop.f32.mrb[0].mxu0
  %v882 = vadd.f32 %v805, %v881
  %v883 = vpop.f32.mrb[0].mxu0
  %v884 = vpop.f32.mrb[0].mxu0
  %v885 = vadd.f32 %v805, %v884
  %v886 = vpop.f32.mrb[0].mxu0
  %887 = vmatprep.mubr.bf16.mxu0 0
  %888 = vmatmul.mubr.bf16.gmra.mrb[0].mxu0 %v829
  %v889 = vpop.f32.mrb[0].mxu0
  %v890 = vadd.f32 %v805, %v889
  %v891 = vpop.f32.mrb[0].mxu0
  %v892 = vpop.f32.mrb[0].mxu0
  %v893 = vadd.f32 %v805, %v892
  %v894 = vpop.f32.mrb[0].mxu0
  %895 = vdwg.mxu0
  %896 = vst [vmem:[#allocation2] sm:$0xff] %v866
  %897 = vst [vmem:[#allocation2 + $0x8] sm:$0xff] %v869
  %898 = vst [vmem:[#allocation2 + $0x10] sm:$0xff] %v874
  %899 = vst [vmem:[#allocation2 + $0x18] sm:$0xff] %v877
  %900 = vst [vmem:[#allocation2 + $0x20] sm:$0xff] %v882
  %901 = vst [vmem:[#allocation2 + $0x28] sm:$0xff] %v885
  %902 = vst [vmem:[#allocation2 + $0x30] sm:$0xff] %v890
  %903 = vst [vmem:[#allocation2 + $0x38] sm:$0xff] %v893
  %v904 = vld [vmem:[#allocation2] sm:$0xff]
  %v909 = vunpack.c.l.b16 %v784
  %v910 = vunpack.c.l.b16 %v785
  %v911 = vunpack.c.l.b16 %v786
  %v912 = vunpack.c.l.b16 %v787
  %v913 = vpack.c.b16 %v910, %v909
  %v914 = vpack.c.b16 %v912, %v911
  %917 = vmatprep.subr.bf16.mxu0 0
  %918 = vmatpush1.bf16.msra.mxu0 %v913
  %919 = vmatprep.subr.bf16.mxu0 0
  %920 = vmatpush1.bf16.msra.mxu0 %v914
  %921 = vmatprep.subr.bf16.mxu0 0
  %922 = vmatpush1.bf16.msra.mxu0 0
  %923 = vmatprep.subr.bf16.mxu0 0
  %924 = vmatpush1.bf16.msra.mxu0 0
  %925 = vmatprep.subr.bf16.mxu0 0
  %926 = vmatpush1.bf16.msra.mxu0 0
  %927 = vmatprep.subr.bf16.mxu0 0
  %928 = vmatpush1.bf16.msra.mxu0 0
  %929 = vmatprep.subr.bf16.mxu0 0
  %930 = vmatpush1.bf16.msra.mxu0 0
  %931 = vmatprep.subr.bf16.mxu0 0
  %932 = vmatpush1.bf16.msra.mxu0 0
  %933 = vmatprep.subr.bf16.mxu0 0
  %934 = vmatpush1.bf16.msra.mxu0 0
  %935 = vmatprep.subr.bf16.mxu0 0
  %936 = vmatpush1.bf16.msra.mxu0 0
  %937 = vmatprep.subr.bf16.mxu0 0
  %938 = vmatpush1.bf16.msra.mxu0 0
  %939 = vmatprep.subr.bf16.mxu0 0
  %940 = vmatpush1.bf16.msra.mxu0 0
  %941 = vmatprep.subr.bf16.mxu0 0
  %942 = vmatpush1.bf16.msra.mxu0 0
  %943 = vmatprep.subr.bf16.mxu0 0
  %944 = vmatpush1.bf16.msra.mxu0 0
  %945 = vmatprep.subr.bf16.mxu0 0
  %946 = vmatpush1.bf16.msra.mxu0 0
  %947 = vmatprep.subr.bf16.mxu0 0
  %948 = vmatpush1.bf16.msra.mxu0 0
  %949 = vmatprep.mubr.bf16.mxu0 0
  %950 = vmatmul.mubr.bf16.gmra.mrb[0].mxu0 %v194
  %v951 = vpop.f32.mrb[0].mxu0
  %v952 = vadd.f32 0.0, %v951
  %v953 = vpop.f32.mrb[0].mxu0
  %v954 = vpop.f32.mrb[0].mxu0
  %v955 = vpop.f32.mrb[0].mxu0
  %956 = vdwg.mxu0
  %v957 = vadd.f32 %v904, %v952
  %v958 = vtanh.pop %v957
  %v959 = vmul.f32 %v958, %v54
  %v960 = vadd.f32 %v959, %v55
  %v961 = vmul.f32 %v960, 0.0
  %963 = vrot.lane.b32.xlu0 %v960, 32
  %v964 = vpop.permute.xlu0 %963
  %v966 = vmul.f32 %v960, %v964
  %968 = vrot.lane.b32.xlu0 %v966, 32
  %v969 = vpop.permute.xlu0 %968
  %v971 = vadd.f32 %v961, %v969
  %v972 = vtanh.pop %v971
  %974 = vrot.lane.b32.xlu0 %v972, 32
  %v975 = vpop.permute.xlu0 %974
  %v977 = vmul.f32 %v960, %v975
  %v978 = vld [vmem:[#allocation2 + $0x8] sm:$0xff]
  %v979 = vpack.c.bf16 %v977, %v977
  %981 = vrot.lane.b32.xlu0 %v979, 64
  %v982 = vpop.permute.xlu0 %981
  %v984 = vsel %vm192, %v982, 0
  %986 = vmatprep.subr.bf16.mxu0 0
  %987 = vmatpush1.bf16.msra.mxu0 %v913
  %988 = vmatprep.subr.bf16.mxu0 0
  %989 = vmatpush1.bf16.msra.mxu0 %v914
  %990 = vmatprep.subr.bf16.mxu0 0
  %991 = vmatpush1.bf16.msra.mxu0 0
  %992 = vmatprep.subr.bf16.mxu0 0
  %993 = vmatpush1.bf16.msra.mxu0 0
  %994 = vmatprep.subr.bf16.mxu0 0
  %995 = vmatpush1.bf16.msra.mxu0 0
  %996 = vmatprep.subr.bf16.mxu0 0
  %997 = vmatpush1.bf16.msra.mxu0 0
  %998 = vmatprep.subr.bf16.mxu0 0
  %999 = vmatpush1.bf16.msra.mxu0 0
  %1000 = vmatprep.subr.bf16.mxu0 0
  %1001 = vmatpush1.bf16.msra.mxu0 0
  %1002 = vmatprep.subr.bf16.mxu0 0
  %1003 = vmatpush1.bf16.msra.mxu0 0
  %1004 = vmatprep.subr.bf16.mxu0 0
  %1005 = vmatpush1.bf16.msra.mxu0 0
  %1006 = vmatprep.subr.bf16.mxu0 0
  %1007 = vmatpush1.bf16.msra.mxu0 0
  %1008 = vmatprep.subr.bf16.mxu0 0
  %1009 = vmatpush1.bf16.msra.mxu0 0
  %1010 = vmatprep.subr.bf16.mxu0 0
  %1011 = vmatpush1.bf16.msra.mxu0 0
  %1012 = vmatprep.subr.bf16.mxu0 0
  %1013 = vmatpush1.bf16.msra.mxu0 0
  %1014 = vmatprep.subr.bf16.mxu0 0
  %1015 = vmatpush1.bf16.msra.mxu0 0
  %1016 = vmatprep.subr.bf16.mxu0 0
  %1017 = vmatpush1.bf16.msra.mxu0 0
  %1018 = vmatprep.mubr.bf16.mxu0 0
  %1019 = vmatmul.mubr.bf16.gmra.mrb[0].mxu0 %v984
  %v1020 = vpop.f32.mrb[0].mxu0
  %v1021 = vadd.f32 0.0, %v1020
  %v1022 = vpop.f32.mrb[0].mxu0
  %v1023 = vpop.f32.mrb[0].mxu0
  %v1024 = vpop.f32.mrb[0].mxu0
  %1025 = vdwg.mxu0
  %v1026 = vadd.f32 %v978, %v1021
  %v1027 = vtanh.pop %v1026
  %v1028 = vmul.f32 %v1027, %v54
  %v1029 = vadd.f32 %v1028, %v55
  %v1030 = vmul.f32 %v1029, %v971
  %1032 = vrot.lane.b32.xlu0 %v1029, 32
  %v1033 = vpop.permute.xlu0 %1032
  %v1035 = vmul.f32 %v1029, %v1033
  %1037 = vrot.lane.b32.xlu0 %v1035, 32
  %v1038 = vpop.permute.xlu0 %1037
  %v1040 = vadd.f32 %v1030, %v1038
  %v1041 = vtanh.pop %v1040
  %1043 = vrot.lane.b32.xlu0 %v1041, 32
  %v1044 = vpop.permute.xlu0 %1043
  %v1046 = vmul.f32 %v1029, %v1044
  %v1047 = vld [vmem:[#allocation2 + $0x10] sm:$0xff]
  %v1048 = vpack.c.bf16 %v1046, %v1046
  %1050 = vrot.lane.b32.xlu0 %v1048, 64
  %v1051 = vpop.permute.xlu0 %1050
  %v1053 = vsel %vm192, %v1051, 0
  %1055 = vmatprep.subr.bf16.mxu0 0
  %1056 = vmatpush1.bf16.msra.mxu0 %v913
  %1057 = vmatprep.subr.bf16.mxu0 0
  %1058 = vmatpush1.bf16.msra.mxu0 %v914
  %1059 = vmatprep.subr.bf16.mxu0 0
  %1060 = vmatpush1.bf16.msra.mxu0 0
  %1061 = vmatprep.subr.bf16.mxu0 0
  %1062 = vmatpush1.bf16.msra.mxu0 0
  %1063 = vmatprep.subr.bf16.mxu0 0
  %1064 = vmatpush1.bf16.msra.mxu0 0
  %1065 = vmatprep.subr.bf16.mxu0 0
  %1066 = vmatpush1.bf16.msra.mxu0 0
  %1067 = vmatprep.subr.bf16.mxu0 0
  %1068 = vmatpush1.bf16.msra.mxu0 0
  %1069 = vmatprep.subr.bf16.mxu0 0
  %1070 = vmatpush1.bf16.msra.mxu0 0
  %1071 = vmatprep.subr.bf16.mxu0 0
  %1072 = vmatpush1.bf16.msra.mxu0 0
  %1073 = vmatprep.subr.bf16.mxu0 0
  %1074 = vmatpush1.bf16.msra.mxu0 0
  %1075 = vmatprep.subr.bf16.mxu0 0
  %1076 = vmatpush1.bf16.msra.mxu0 0
  %1077 = vmatprep.subr.bf16.mxu0 0
  %1078 = vmatpush1.bf16.msra.mxu0 0
  %1079 = vmatprep.subr.bf16.mxu0 0
  %1080 = vmatpush1.bf16.msra.mxu0 0
  %1081 = vmatprep.subr.bf16.mxu0 0
  %1082 = vmatpush1.bf16.msra.mxu0 0
  %1083 = vmatprep.subr.bf16.mxu0 0
  %1084 = vmatpush1.bf16.msra.mxu0 0
  %1085 = vmatprep.subr.bf16.mxu0 0
  %1086 = vmatpush1.bf16.msra.mxu0 0
  %1087 = vmatprep.mubr.bf16.mxu0 0
  %1088 = vmatmul.mubr.bf16.gmra.mrb[0].mxu0 %v1053
  %v1089 = vpop.f32.mrb[0].mxu0
  %v1090 = vadd.f32 0.0, %v1089
  %v1091 = vpop.f32.mrb[0].mxu0
  %v1092 = vpop.f32.mrb[0].mxu0
  %v1093 = vpop.f32.mrb[0].mxu0
  %1094 = vdwg.mxu0
  %v1095 = vadd.f32 %v1047, %v1090
  %v1096 = vtanh.pop %v1095
  %v1097 = vmul.f32 %v1096, %v54
  %v1098 = vadd.f32 %v1097, %v55
  %v1099 = vmul.f32 %v1098, %v1040
  %1101 = vrot.lane.b32.xlu0 %v1098, 32
  %v1102 = vpop.permute.xlu0 %1101
  %v1104 = vmul.f32 %v1098, %v1102
  %1106 = vrot.lane.b32.xlu0 %v1104, 32
  %v1107 = vpop.permute.xlu0 %1106
  %v1109 = vadd.f32 %v1099, %v1107
  %v1110 = vtanh.pop %v1109
  %1112 = vrot.lane.b32.xlu0 %v1110, 32
  %v1113 = vpop.permute.xlu0 %1112
  %v1115 = vmul.f32 %v1098, %v1113
  %v1116 = vld [vmem:[#allocation2 + $0x18] sm:$0xff]
  %v1117 = vpack.c.bf16 %v1115, %v1115
  %1119 = vrot.lane.b32.xlu0 %v1117, 64
  %v1120 = vpop.permute.xlu0 %1119
  %v1122 = vsel %vm192, %v1120, 0
  %1124 = vmatprep.subr.bf16.mxu0 0
  %1125 = vmatpush1.bf16.msra.mxu0 %v913
  %1126 = vmatprep.subr.bf16.mxu0 0
  %1127 = vmatpush1.bf16.msra.mxu0 %v914
  %1128 = vmatprep.subr.bf16.mxu0 0
  %1129 = vmatpush1.bf16.msra.mxu0 0
  %1130 = vmatprep.subr.bf16.mxu0 0
  %1131 = vmatpush1.bf16.msra.mxu0 0
  %1132 = vmatprep.subr.bf16.mxu0 0
  %1133 = vmatpush1.bf16.msra.mxu0 0
  %1134 = vmatprep.subr.bf16.mxu0 0
  %1135 = vmatpush1.bf16.msra.mxu0 0
  %1136 = vmatprep.subr.bf16.mxu0 0
  %1137 = vmatpush1.bf16.msra.mxu0 0
  %1138 = vmatprep.subr.bf16.mxu0 0
  %1139 = vmatpush1.bf16.msra.mxu0 0
  %1140 = vmatprep.subr.bf16.mxu0 0
  %1141 = vmatpush1.bf16.msra.mxu0 0
  %1142 = vmatprep.subr.bf16.mxu0 0
  %1143 = vmatpush1.bf16.msra.mxu0 0
  %1144 = vmatprep.subr.bf16.mxu0 0
  %1145 = vmatpush1.bf16.msra.mxu0 0
  %1146 = vmatprep.subr.bf16.mxu0 0
  %1147 = vmatpush1.bf16.msra.mxu0 0
  %1148 = vmatprep.subr.bf16.mxu0 0
  %1149 = vmatpush1.bf16.msra.mxu0 0
  %1150 = vmatprep.subr.bf16.mxu0 0
  %1151 = vmatpush1.bf16.msra.mxu0 0
  %1152 = vmatprep.subr.bf16.mxu0 0
  %1153 = vmatpush1.bf16.msra.mxu0 0
  %1154 = vmatprep.subr.bf16.mxu0 0
  %1155 = vmatpush1.bf16.msra.mxu0 0
  %1156 = vmatprep.mubr.bf16.mxu0 0
  %1157 = vmatmul.mubr.bf16.gmra.mrb[0].mxu0 %v1122
  %v1158 = vpop.f32.mrb[0].mxu0
  %v1159 = vadd.f32 0.0, %v1158
  %v1160 = vpop.f32.mrb[0].mxu0
  %v1161 = vpop.f32.mrb[0].mxu0
  %v1162 = vpop.f32.mrb[0].mxu0
  %1163 = vdwg.mxu0
  %v1164 = vadd.f32 %v1116, %v1159
  %v1165 = vtanh.pop %v1164
  %v1166 = vmul.f32 %v1165, %v54
  %v1167 = vadd.f32 %v1166, %v55
  %v1168 = vmul.f32 %v1167, %v1109
  %1170 = vrot.lane.b32.xlu0 %v1167, 32
  %v1171 = vpop.permute.xlu0 %1170
  %v1173 = vmul.f32 %v1167, %v1171
  %1175 = vrot.lane.b32.xlu0 %v1173, 32
  %v1176 = vpop.permute.xlu0 %1175
  %v1178 = vadd.f32 %v1168, %v1176
  %v1179 = vtanh.pop %v1178
  %1181 = vrot.lane.b32.xlu0 %v1179, 32
  %v1182 = vpop.permute.xlu0 %1181
  %v1184 = vmul.f32 %v1167, %v1182
  %v1185 = vld [vmem:[#allocation2 + $0x20] sm:$0xff]
  %v1186 = vpack.c.bf16 %v1184, %v1184
  %1188 = vrot.lane.b32.xlu0 %v1186, 64
  %v1189 = vpop.permute.xlu0 %1188
  %v1191 = vsel %vm192, %v1189, 0
  %1193 = vmatprep.subr.bf16.mxu0 0
  %1194 = vmatpush1.bf16.msra.mxu0 %v913
  %1195 = vmatprep.subr.bf16.mxu0 0
  %1196 = vmatpush1.bf16.msra.mxu0 %v914
  %1197 = vmatprep.subr.bf16.mxu0 0
  %1198 = vmatpush1.bf16.msra.mxu0 0
  %1199 = vmatprep.subr.bf16.mxu0 0
  %1200 = vmatpush1.bf16.msra.mxu0 0
  %1201 = vmatprep.subr.bf16.mxu0 0
  %1202 = vmatpush1.bf16.msra.mxu0 0
  %1203 = vmatprep.subr.bf16.mxu0 0
  %1204 = vmatpush1.bf16.msra.mxu0 0
  %1205 = vmatprep.subr.bf16.mxu0 0
  %1206 = vmatpush1.bf16.msra.mxu0 0
  %1207 = vmatprep.subr.bf16.mxu0 0
  %1208 = vmatpush1.bf16.msra.mxu0 0
  %1209 = vmatprep.subr.bf16.mxu0 0
  %1210 = vmatpush1.bf16.msra.mxu0 0
  %1211 = vmatprep.subr.bf16.mxu0 0
  %1212 = vmatpush1.bf16.msra.mxu0 0
  %1213 = vmatprep.subr.bf16.mxu0 0
  %1214 = vmatpush1.bf16.msra.mxu0 0
  %1215 = vmatprep.subr.bf16.mxu0 0
  %1216 = vmatpush1.bf16.msra.mxu0 0
  %1217 = vmatprep.subr.bf16.mxu0 0
  %1218 = vmatpush1.bf16.msra.mxu0 0
  %1219 = vmatprep.subr.bf16.mxu0 0
  %1220 = vmatpush1.bf16.msra.mxu0 0
  %1221 = vmatprep.subr.bf16.mxu0 0
  %1222 = vmatpush1.bf16.msra.mxu0 0
  %1223 = vmatprep.subr.bf16.mxu0 0
  %1224 = vmatpush1.bf16.msra.mxu0 0
  %1225 = vmatprep.mubr.bf16.mxu0 0
  %1226 = vmatmul.mubr.bf16.gmra.mrb[0].mxu0 %v1191
  %v1227 = vpop.f32.mrb[0].mxu0
  %v1228 = vadd.f32 0.0, %v1227
  %v1229 = vpop.f32.mrb[0].mxu0
  %v1230 = vpop.f32.mrb[0].mxu0
  %v1231 = vpop.f32.mrb[0].mxu0
  %1232 = vdwg.mxu0
  %v1233 = vadd.f32 %v1185, %v1228
  %v1234 = vtanh.pop %v1233
  %v1235 = vmul.f32 %v1234, %v54
  %v1236 = vadd.f32 %v1235, %v55
  %v1237 = vmul.f32 %v1236, %v1178
  %1239 = vrot.lane.b32.xlu0 %v1236, 32
  %v1240 = vpop.permute.xlu0 %1239
  %v1242 = vmul.f32 %v1236, %v1240
  %1244 = vrot.lane.b32.xlu0 %v1242, 32
  %v1245 = vpop.permute.xlu0 %1244
  %v1247 = vadd.f32 %v1237, %v1245
  %v1248 = vtanh.pop %v1247
  %1250 = vrot.lane.b32.xlu0 %v1248, 32
  %v1251 = vpop.permute.xlu0 %1250
  %v1253 = vmul.f32 %v1236, %v1251
  %v1254 = vld [vmem:[#allocation2 + $0x28] sm:$0xff]
  %v1255 = vpack.c.bf16 %v1253, %v1253
  %1257 = vrot.lane.b32.xlu0 %v1255, 64
  %v1258 = vpop.permute.xlu0 %1257
  %v1260 = vsel %vm192, %v1258, 0
  %1262 = vmatprep.subr.bf16.mxu0 0
  %1263 = vmatpush1.bf16.msra.mxu0 %v913
  %1264 = vmatprep.subr.bf16.mxu0 0
  %1265 = vmatpush1.bf16.msra.mxu0 %v914
  %1266 = vmatprep.subr.bf16.mxu0 0
  %1267 = vmatpush1.bf16.msra.mxu0 0
  %1268 = vmatprep.subr.bf16.mxu0 0
  %1269 = vmatpush1.bf16.msra.mxu0 0
  %1270 = vmatprep.subr.bf16.mxu0 0
  %1271 = vmatpush1.bf16.msra.mxu0 0
  %1272 = vmatprep.subr.bf16.mxu0 0
  %1273 = vmatpush1.bf16.msra.mxu0 0
  %1274 = vmatprep.subr.bf16.mxu0 0
  %1275 = vmatpush1.bf16.msra.mxu0 0
  %1276 = vmatprep.subr.bf16.mxu0 0
  %1277 = vmatpush1.bf16.msra.mxu0 0
  %1278 = vmatprep.subr.bf16.mxu0 0
  %1279 = vmatpush1.bf16.msra.mxu0 0
  %1280 = vmatprep.subr.bf16.mxu0 0
  %1281 = vmatpush1.bf16.msra.mxu0 0
  %1282 = vmatprep.subr.bf16.mxu0 0
  %1283 = vmatpush1.bf16.msra.mxu0 0
  %1284 = vmatprep.subr.bf16.mxu0 0
  %1285 = vmatpush1.bf16.msra.mxu0 0
  %1286 = vmatprep.subr.bf16.mxu0 0
  %1287 = vmatpush1.bf16.msra.mxu0 0
  %1288 = vmatprep.subr.bf16.mxu0 0
  %1289 = vmatpush1.bf16.msra.mxu0 0
  %1290 = vmatprep.subr.bf16.mxu0 0
  %1291 = vmatpush1.bf16.msra.mxu0 0
  %1292 = vmatprep.subr.bf16.mxu0 0
  %1293 = vmatpush1.bf16.msra.mxu0 0
  %1294 = vmatprep.mubr.bf16.mxu0 0
  %1295 = vmatmul.mubr.bf16.gmra.mrb[0].mxu0 %v1260
  %v1296 = vpop.f32.mrb[0].mxu0
  %v1297 = vadd.f32 0.0, %v1296
  %v1298 = vpop.f32.mrb[0].mxu0
  %v1299 = vpop.f32.mrb[0].mxu0
  %v1300 = vpop.f32.mrb[0].mxu0
  %1301 = vdwg.mxu0
  %v1302 = vadd.f32 %v1254, %v1297
  %v1303 = vtanh.pop %v1302
  %v1304 = vmul.f32 %v1303, %v54
  %v1305 = vadd.f32 %v1304, %v55
  %v1306 = vmul.f32 %v1305, %v1247
  %1308 = vrot.lane.b32.xlu0 %v1305, 32
  %v1309 = vpop.permute.xlu0 %1308
  %v1311 = vmul.f32 %v1305, %v1309
  %1313 = vrot.lane.b32.xlu0 %v1311, 32
  %v1314 = vpop.permute.xlu0 %1313
  %v1316 = vadd.f32 %v1306, %v1314
  %v1317 = vtanh.pop %v1316
  %1319 = vrot.lane.b32.xlu0 %v1317, 32
  %v1320 = vpop.permute.xlu0 %1319
  %v1322 = vmul.f32 %v1305, %v1320
  %v1323 = vld [vmem:[#allocation2 + $0x30] sm:$0xff]
  %v1324 = vpack.c.bf16 %v1322, %v1322
  %1326 = vrot.lane.b32.xlu0 %v1324, 64
  %v1327 = vpop.permute.xlu0 %1326
  %v1329 = vsel %vm192, %v1327, 0
  %1331 = vmatprep.subr.bf16.mxu0 0
  %1332 = vmatpush1.bf16.msra.mxu0 %v913
  %1333 = vmatprep.subr.bf16.mxu0 0
  %1334 = vmatpush1.bf16.msra.mxu0 %v914
  %1335 = vmatprep.subr.bf16.mxu0 0
  %1336 = vmatpush1.bf16.msra.mxu0 0
  %1337 = vmatprep.subr.bf16.mxu0 0
  %1338 = vmatpush1.bf16.msra.mxu0 0
  %1339 = vmatprep.subr.bf16.mxu0 0
  %1340 = vmatpush1.bf16.msra.mxu0 0
  %1341 = vmatprep.subr.bf16.mxu0 0
  %1342 = vmatpush1.bf16.msra.mxu0 0
  %1343 = vmatprep.subr.bf16.mxu0 0
  %1344 = vmatpush1.bf16.msra.mxu0 0
  %1345 = vmatprep.subr.bf16.mxu0 0
  %1346 = vmatpush1.bf16.msra.mxu0 0
  %1347 = vmatprep.subr.bf16.mxu0 0
  %1348 = vmatpush1.bf16.msra.mxu0 0
  %1349 = vmatprep.subr.bf16.mxu0 0
  %1350 = vmatpush1.bf16.msra.mxu0 0
  %1351 = vmatprep.subr.bf16.mxu0 0
  %1352 = vmatpush1.bf16.msra.mxu0 0
  %1353 = vmatprep.subr.bf16.mxu0 0
  %1354 = vmatpush1.bf16.msra.mxu0 0
  %1355 = vmatprep.subr.bf16.mxu0 0
  %1356 = vmatpush1.bf16.msra.mxu0 0
  %1357 = vmatprep.subr.bf16.mxu0 0
  %1358 = vmatpush1.bf16.msra.mxu0 0
  %1359 = vmatprep.subr.bf16.mxu0 0
  %1360 = vmatpush1.bf16.msra.mxu0 0
  %1361 = vmatprep.subr.bf16.mxu0 0
  %1362 = vmatpush1.bf16.msra.mxu0 0
  %1363 = vmatprep.mubr.bf16.mxu0 0
  %1364 = vmatmul.mubr.bf16.gmra.mrb[0].mxu0 %v1329
  %v1365 = vpop.f32.mrb[0].mxu0
  %v1366 = vadd.f32 0.0, %v1365
  %v1367 = vpop.f32.mrb[0].mxu0
  %v1368 = vpop.f32.mrb[0].mxu0
  %v1369 = vpop.f32.mrb[0].mxu0
  %1370 = vdwg.mxu0
  %v1371 = vadd.f32 %v1323, %v1366
  %v1372 = vtanh.pop %v1371
  %v1373 = vmul.f32 %v1372, %v54
  %v1374 = vadd.f32 %v1373, %v55
  %v1375 = vmul.f32 %v1374, %v1316
  %1377 = vrot.lane.b32.xlu0 %v1374, 32
  %v1378 = vpop.permute.xlu0 %1377
  %v1380 = vmul.f32 %v1374, %v1378
  %1382 = vrot.lane.b32.xlu0 %v1380, 32
  %v1383 = vpop.permute.xlu0 %1382
  %v1385 = vadd.f32 %v1375, %v1383
  %v1386 = vtanh.pop %v1385
  %1388 = vrot.lane.b32.xlu0 %v1386, 32
  %v1389 = vpop.permute.xlu0 %1388
  %v1391 = vmul.f32 %v1374, %v1389
  %v1392 = vld [vmem:[#allocation2 + $0x38] sm:$0xff]
  %v1393 = vpack.c.bf16 %v1391, %v1391
  %1395 = vrot.lane.b32.xlu0 %v1393, 64
  %v1396 = vpop.permute.xlu0 %1395
  %v1398 = vsel %vm192, %v1396, 0
  %1400 = vmatprep.subr.bf16.mxu0 0
  %1401 = vmatpush1.bf16.msra.mxu0 %v913
  %1402 = vmatprep.subr.bf16.mxu0 0
  %1403 = vmatpush1.bf16.msra.mxu0 %v914
  %1404 = vmatprep.subr.bf16.mxu0 0
  %1405 = vmatpush1.bf16.msra.mxu0 0
  %1406 = vmatprep.subr.bf16.mxu0 0
  %1407 = vmatpush1.bf16.msra.mxu0 0
  %1408 = vmatprep.subr.bf16.mxu0 0
  %1409 = vmatpush1.bf16.msra.mxu0 0
  %1410 = vmatprep.subr.bf16.mxu0 0
  %1411 = vmatpush1.bf16.msra.mxu0 0
  %1412 = vmatprep.subr.bf16.mxu0 0
  %1413 = vmatpush1.bf16.msra.mxu0 0
  %1414 = vmatprep.subr.bf16.mxu0 0
  %1415 = vmatpush1.bf16.msra.mxu0 0
  %1416 = vmatprep.subr.bf16.mxu0 0
  %1417 = vmatpush1.bf16.msra.mxu0 0
  %1418 = vmatprep.subr.bf16.mxu0 0
  %1419 = vmatpush1.bf16.msra.mxu0 0
  %1420 = vmatprep.subr.bf16.mxu0 0
  %1421 = vmatpush1.bf16.msra.mxu0 0
  %1422 = vmatprep.subr.bf16.mxu0 0
  %1423 = vmatpush1.bf16.msra.mxu0 0
  %1424 = vmatprep.subr.bf16.mxu0 0
  %1425 = vmatpush1.bf16.msra.mxu0 0
  %1426 = vmatprep.subr.bf16.mxu0 0
  %1427 = vmatpush1.bf16.msra.mxu0 0
  %1428 = vmatprep.subr.bf16.mxu0 0
  %1429 = vmatpush1.bf16.msra.mxu0 0
  %1430 = vmatprep.subr.bf16.mxu0 0
  %1431 = vmatpush1.bf16.msra.mxu0 0
  %1432 = vmatprep.mubr.bf16.mxu0 0
  %1433 = vmatmul.mubr.bf16.gmra.mrb[0].mxu0 %v1398
  %v1434 = vpop.f32.mrb[0].mxu0
  %v1435 = vadd.f32 0.0, %v1434
  %v1436 = vpop.f32.mrb[0].mxu0
  %v1437 = vpop.f32.mrb[0].mxu0
  %v1438 = vpop.f32.mrb[0].mxu0
  %1439 = vdwg.mxu0
  %v1440 = vadd.f32 %v1392, %v1435
  %v1441 = vtanh.pop %v1440
  %v1442 = vmul.f32 %v1441, %v54
  %v1443 = vadd.f32 %v1442, %v55
  %v1444 = vmul.f32 %v1443, %v1385
  %1446 = vrot.lane.b32.xlu0 %v1443, 32
  %v1447 = vpop.permute.xlu0 %1446
  %v1449 = vmul.f32 %v1443, %v1447
  %1451 = vrot.lane.b32.xlu0 %v1449, 32
  %v1452 = vpop.permute.xlu0 %1451
  %v1454 = vadd.f32 %v1444, %v1452
  %v1455 = vtanh.pop %v1454
  %1457 = vrot.lane.b32.xlu0 %v1455, 32
  %v1458 = vpop.permute.xlu0 %1457
  %v1460 = vmul.f32 %v1443, %v1458
  %v1461 = vld [vmem:[%s7] sm:$0xf]
  %v1462 = vld [vmem:[%s7 + $0x4] sm:$0xf]
  %v1463 = vld [vmem:[%s7 + $0x8] sm:$0xf]
  %v1464 = vld [vmem:[%s7 + $0xc] sm:$0xf]
  %v1465 = vld [vmem:[%s8] sm:$0x1]
  %v1466 = vld [vmem:[%s9] sm:$0xf]
  %v1467 = vld [vmem:[%s9 + $0x4] sm:$0xf]
  %v1468 = vld [vmem:[%s9 + $0x8] sm:$0xf]
  %v1469 = vld [vmem:[%s9 + $0xc] sm:$0xf]
  %v1470 = vld [vmem:[%s9 + $0x10] sm:$0xf]
  %v1471 = vld [vmem:[%s9 + $0x14] sm:$0xf]
  %v1472 = vld [vmem:[%s9 + $0x18] sm:$0xf]
  %v1473 = vld [vmem:[%s9 + $0x1c] sm:$0xf]
  %v1474 = vld [vmem:[%s9 + $0x20] sm:$0xf]
  %v1475 = vld [vmem:[%s9 + $0x24] sm:$0xf]
  %v1476 = vld [vmem:[%s9 + $0x28] sm:$0xf]
  %v1477 = vld [vmem:[%s9 + $0x2c] sm:$0xf]
  %v1478 = vld [vmem:[%s9 + $0x30] sm:$0xf]
  %v1479 = vld [vmem:[%s9 + $0x34] sm:$0xf]
  %v1480 = vld [vmem:[%s9 + $0x38] sm:$0xf]
  %v1481 = vld [vmem:[%s9 + $0x3c] sm:$0xf]
  %v1482 = vld [vmem:[%s10] sm:$0x1]
  %v1483 = vld [vmem:[%s11] sm:$0xf]
  %v1484 = vld [vmem:[%s11 + $0x4] sm:$0xf]
  %v1485 = vld [vmem:[%s11 + $0x8] sm:$0xf]
  %v1486 = vld [vmem:[%s11 + $0xc] sm:$0xf]
  %v1487 = vld [vmem:[%s11 + $0x10] sm:$0xf]
  %v1488 = vld [vmem:[%s11 + $0x14] sm:$0xf]
  %v1489 = vld [vmem:[%s11 + $0x18] sm:$0xf]
  %v1490 = vld [vmem:[%s11 + $0x1c] sm:$0xf]
  %v1491 = vld [vmem:[%s11 + $0x20] sm:$0xf]
  %v1492 = vld [vmem:[%s11 + $0x24] sm:$0xf]
  %v1493 = vld [vmem:[%s11 + $0x28] sm:$0xf]
  %v1494 = vld [vmem:[%s11 + $0x2c] sm:$0xf]
  %v1495 = vld [vmem:[%s11 + $0x30] sm:$0xf]
  %v1496 = vld [vmem:[%s11 + $0x34] sm:$0xf]
  %v1497 = vld [vmem:[%s11 + $0x38] sm:$0xf]
  %v1498 = vld [vmem:[%s11 + $0x3c] sm:$0xf]
  %v1499 = vld [vmem:[%s12] sm:$0x1]
  %v1500 = vld [vmem:[%s13] sm:$0xf]
  %v1501 = vld [vmem:[%s13 + $0x4] sm:$0xf]
  %v1502 = vld [vmem:[%s13 + $0x8] sm:$0xf]
  %v1503 = vld [vmem:[%s13 + $0xc] sm:$0xf]
  %v1504 = vld [vmem:[%s13 + $0x10] sm:$0xf]
  %v1505 = vld [vmem:[%s13 + $0x14] sm:$0xf]
  %v1506 = vld [vmem:[%s13 + $0x18] sm:$0xf]
  %v1507 = vld [vmem:[%s13 + $0x1c] sm:$0xf]
  %v1508 = vld [vmem:[%s13 + $0x20] sm:$0xf]
  %v1509 = vld [vmem:[%s13 + $0x24] sm:$0xf]
  %v1510 = vld [vmem:[%s13 + $0x28] sm:$0xf]
  %v1511 = vld [vmem:[%s13 + $0x2c] sm:$0xf]
  %v1512 = vld [vmem:[%s13 + $0x30] sm:$0xf]
  %v1513 = vld [vmem:[%s13 + $0x34] sm:$0xf]
  %v1514 = vld [vmem:[%s13 + $0x38] sm:$0xf]
  %v1515 = vld [vmem:[%s13 + $0x3c] sm:$0xf]
  %v1516 = vld [vmem:[%s14] sm:$0x1]
  %v1517 = vpack.c.bf16 %v1460, %v774
  %v1519 = vlaneseq
  %v1520 = vshrl.u32 %v1519, 7
  %v1521 = vsub.s32 0, %v1520
  %v1522 = vrot.slane %v1465, %v1521
  %1525 = vrot.lane.b32.xlu0 %v1517, 64
  %v1526 = vpop.permute.xlu0 %1525
  %v1531 = vunpack.c.l.b16 %v1461
  %v1532 = vunpack.c.l.b16 %v1462
  %v1533 = vunpack.c.l.b16 %v1463
  %v1534 = vunpack.c.l.b16 %v1464
  %v1535 = vpack.c.b16 %v1532, %v1531
  %v1536 = vpack.c.b16 %v1534, %v1533
  %v1540 = vsel %vm192, %v1526, 0
  %1542 = vmatprep.subr.bf16.mxu0 0
  %1543 = vmatpush1.bf16.msra.mxu0 %v1535
  %1544 = vmatprep.subr.bf16.mxu0 0
  %1545 = vmatpush1.bf16.msra.mxu0 %v1536
  %1546 = vmatprep.subr.bf16.mxu0 0
  %1547 = vmatpush1.bf16.msra.mxu0 0
  %1548 = vmatprep.subr.bf16.mxu0 0
  %1549 = vmatpush1.bf16.msra.mxu0 0
  %1550 = vmatprep.subr.bf16.mxu0 0
  %1551 = vmatpush1.bf16.msra.mxu0 0
  %1552 = vmatprep.subr.bf16.mxu0 0
  %1553 = vmatpush1.bf16.msra.mxu0 0
  %1554 = vmatprep.subr.bf16.mxu0 0
  %1555 = vmatpush1.bf16.msra.mxu0 0
  %1556 = vmatprep.subr.bf16.mxu0 0
  %1557 = vmatpush1.bf16.msra.mxu0 0
  %1558 = vmatprep.subr.bf16.mxu0 0
  %1559 = vmatpush1.bf16.msra.mxu0 0
  %1560 = vmatprep.subr.bf16.mxu0 0
  %1561 = vmatpush1.bf16.msra.mxu0 0
  %1562 = vmatprep.subr.bf16.mxu0 0
  %1563 = vmatpush1.bf16.msra.mxu0 0
  %1564 = vmatprep.subr.bf16.mxu0 0
  %1565 = vmatpush1.bf16.msra.mxu0 0
  %1566 = vmatprep.subr.bf16.mxu0 0
  %1567 = vmatpush1.bf16.msra.mxu0 0
  %1568 = vmatprep.subr.bf16.mxu0 0
  %1569 = vmatpush1.bf16.msra.mxu0 0
  %1570 = vmatprep.subr.bf16.mxu0 0
  %1571 = vmatpush1.bf16.msra.mxu0 0
  %1572 = vmatprep.subr.bf16.mxu0 0
  %1573 = vmatpush1.bf16.msra.mxu0 0
  %1574 = vmatprep.mubr.bf16.mxu0 0
  %1575 = vmatmul.mubr.bf16.gmra.mrb[0].mxu0 %v1540
  %v1576 = vpop.f32.mrb[0].mxu0
  %v1577 = vadd.f32 %v1522, %v1576
  %v1578 = vpop.f32.mrb[0].mxu0
  %v1579 = vpop.f32.mrb[0].mxu0
  %v1580 = vadd.f32 %v1522, %v1579
  %v1581 = vpop.f32.mrb[0].mxu0
  %1582 = vdwg.mxu0
  %v1583 = vmax.f32 %v1577, 0.0
  %v1584 = vmax.f32 %v1580, 0.0
  %v1585 = vpack.c.bf16 %v1584, %v1583
  %v1587 = vlaneseq
  %v1588 = vshrl.u32 %v1587, 7
  %v1589 = vsub.s32 0, %v1588
  %v1590 = vrot.slane %v1482, %v1589
  %v1608 = vunpack.c.l.b16 %v1466
  %v1609 = vunpack.c.l.b16 %v1467
  %v1610 = vunpack.c.l.b16 %v1468
  %v1611 = vunpack.c.l.b16 %v1469
  %v1612 = vunpack.c.l.b16 %v1470
  %v1613 = vunpack.c.l.b16 %v1471
  %v1614 = vunpack.c.l.b16 %v1472
  %v1615 = vunpack.c.l.b16 %v1473
  %v1616 = vunpack.c.l.b16 %v1474
  %v1617 = vunpack.c.l.b16 %v1475
  %v1618 = vunpack.c.l.b16 %v1476
  %v1619 = vunpack.c.l.b16 %v1477
  %v1620 = vunpack.c.l.b16 %v1478
  %v1621 = vunpack.c.l.b16 %v1479
  %v1622 = vunpack.c.l.b16 %v1480
  %v1623 = vunpack.c.l.b16 %v1481
  %v1624 = vpack.c.b16 %v1609, %v1608
  %v1625 = vpack.c.b16 %v1611, %v1610
  %v1626 = vpack.c.b16 %v1613, %v1612
  %v1627 = vpack.c.b16 %v1615, %v1614
  %v1628 = vpack.c.b16 %v1617, %v1616
  %v1629 = vpack.c.b16 %v1619, %v1618
  %v1630 = vpack.c.b16 %v1621, %v1620
  %v1631 = vpack.c.b16 %v1623, %v1622
  %1640 = vmatprep.subr.bf16.mxu0 0
  %1641 = vmatpush1.bf16.msra.mxu0 %v1624
  %1642 = vmatprep.subr.bf16.mxu0 0
  %1643 = vmatpush1.bf16.msra.mxu0 %v1625
  %1644 = vmatprep.subr.bf16.mxu0 0
  %1645 = vmatpush1.bf16.msra.mxu0 %v1626
  %1646 = vmatprep.subr.bf16.mxu0 0
  %1647 = vmatpush1.bf16.msra.mxu0 %v1627
  %1648 = vmatprep.subr.bf16.mxu0 0
  %1649 = vmatpush1.bf16.msra.mxu0 %v1628
  %1650 = vmatprep.subr.bf16.mxu0 0
  %1651 = vmatpush1.bf16.msra.mxu0 %v1629
  %1652 = vmatprep.subr.bf16.mxu0 0
  %1653 = vmatpush1.bf16.msra.mxu0 %v1630
  %1654 = vmatprep.subr.bf16.mxu0 0
  %1655 = vmatpush1.bf16.msra.mxu0 %v1631
  %1656 = vmatprep.subr.bf16.mxu0 0
  %1657 = vmatpush1.bf16.msra.mxu0 0
  %1658 = vmatprep.subr.bf16.mxu0 0
  %1659 = vmatpush1.bf16.msra.mxu0 0
  %1660 = vmatprep.subr.bf16.mxu0 0
  %1661 = vmatpush1.bf16.msra.mxu0 0
  %1662 = vmatprep.subr.bf16.mxu0 0
  %1663 = vmatpush1.bf16.msra.mxu0 0
  %1664 = vmatprep.subr.bf16.mxu0 0
  %1665 = vmatpush1.bf16.msra.mxu0 0
  %1666 = vmatprep.subr.bf16.mxu0 0
  %1667 = vmatpush1.bf16.msra.mxu0 0
  %1668 = vmatprep.subr.bf16.mxu0 0
  %1669 = vmatpush1.bf16.msra.mxu0 0
  %1670 = vmatprep.subr.bf16.mxu0 0
  %1671 = vmatpush1.bf16.msra.mxu0 0
  %1672 = vmatprep.mubr.bf16.mxu0 0
  %1673 = vmatmul.mubr.bf16.gmra.mrb[0].mxu0 %v1585
  %v1674 = vpop.f32.mrb[0].mxu0
  %v1675 = vadd.f32 %v1590, %v1674
  %v1676 = vpop.f32.mrb[0].mxu0
  %v1677 = vpop.f32.mrb[0].mxu0
  %v1678 = vadd.f32 %v1590, %v1677
  %v1679 = vpop.f32.mrb[0].mxu0
  %1680 = vdwg.mxu0
  %v1681 = vmax.f32 %v1675, 0.0
  %v1682 = vmax.f32 %v1678, 0.0
  %v1683 = vpack.c.bf16 %v1682, %v1681
  %v1685 = vlaneseq
  %v1686 = vshrl.u32 %v1685, 7
  %v1687 = vsub.s32 0, %v1686
  %v1688 = vrot.slane %v1499, %v1687
  %v1706 = vunpack.c.l.b16 %v1483
  %v1707 = vunpack.c.l.b16 %v1484
  %v1708 = vunpack.c.l.b16 %v1485
  %v1709 = vunpack.c.l.b16 %v1486
  %v1710 = vunpack.c.l.b16 %v1487
  %v1711 = vunpack.c.l.b16 %v1488
  %v1712 = vunpack.c.l.b16 %v1489
  %v1713 = vunpack.c.l.b16 %v1490
  %v1714 = vunpack.c.l.b16 %v1491
  %v1715 = vunpack.c.l.b16 %v1492
  %v1716 = vunpack.c.l.b16 %v1493
  %v1717 = vunpack.c.l.b16 %v1494
  %v1718 = vunpack.c.l.b16 %v1495
  %v1719 = vunpack.c.l.b16 %v1496
  %v1720 = vunpack.c.l.b16 %v1497
  %v1721 = vunpack.c.l.b16 %v1498
  %v1722 = vpack.c.b16 %v1707, %v1706
  %v1723 = vpack.c.b16 %v1709, %v1708
  %v1724 = vpack.c.b16 %v1711, %v1710
  %v1725 = vpack.c.b16 %v1713, %v1712
  %v1726 = vpack.c.b16 %v1715, %v1714
  %v1727 = vpack.c.b16 %v1717, %v1716
  %v1728 = vpack.c.b16 %v1719, %v1718
  %v1729 = vpack.c.b16 %v1721, %v1720
  %1738 = vmatprep.subr.bf16.mxu0 0
  %1739 = vmatpush1.bf16.msra.mxu0 %v1722
  %1740 = vmatprep.subr.bf16.mxu0 0
  %1741 = vmatpush1.bf16.msra.mxu0 %v1723
  %1742 = vmatprep.subr.bf16.mxu0 0
  %1743 = vmatpush1.bf16.msra.mxu0 %v1724
  %1744 = vmatprep.subr.bf16.mxu0 0
  %1745 = vmatpush1.bf16.msra.mxu0 %v1725
  %1746 = vmatprep.subr.bf16.mxu0 0
  %1747 = vmatpush1.bf16.msra.mxu0 %v1726
  %1748 = vmatprep.subr.bf16.mxu0 0
  %1749 = vmatpush1.bf16.msra.mxu0 %v1727
  %1750 = vmatprep.subr.bf16.mxu0 0
  %1751 = vmatpush1.bf16.msra.mxu0 %v1728
  %1752 = vmatprep.subr.bf16.mxu0 0
  %1753 = vmatpush1.bf16.msra.mxu0 %v1729
  %1754 = vmatprep.subr.bf16.mxu0 0
  %1755 = vmatpush1.bf16.msra.mxu0 0
  %1756 = vmatprep.subr.bf16.mxu0 0
  %1757 = vmatpush1.bf16.msra.mxu0 0
  %1758 = vmatprep.subr.bf16.mxu0 0
  %1759 = vmatpush1.bf16.msra.mxu0 0
  %1760 = vmatprep.subr.bf16.mxu0 0
  %1761 = vmatpush1.bf16.msra.mxu0 0
  %1762 = vmatprep.subr.bf16.mxu0 0
  %1763 = vmatpush1.bf16.msra.mxu0 0
  %1764 = vmatprep.subr.bf16.mxu0 0
  %1765 = vmatpush1.bf16.msra.mxu0 0
  %1766 = vmatprep.subr.bf16.mxu0 0
  %1767 = vmatpush1.bf16.msra.mxu0 0
  %1768 = vmatprep.subr.bf16.mxu0 0
  %1769 = vmatpush1.bf16.msra.mxu0 0
  %1770 = vmatprep.mubr.bf16.mxu0 0
  %1771 = vmatmul.mubr.bf16.gmra.mrb[0].mxu0 %v1683
  %v1772 = vpop.f32.mrb[0].mxu0
  %v1773 = vadd.f32 %v1688, %v1772
  %v1774 = vpop.f32.mrb[0].mxu0
  %v1775 = vpop.f32.mrb[0].mxu0
  %v1776 = vadd.f32 %v1688, %v1775
  %v1777 = vpop.f32.mrb[0].mxu0
  %1778 = vdwg.mxu0
  %v1779 = vmax.f32 %v1773, 0.0
  %v1780 = vmax.f32 %v1776, 0.0
  %v1781 = vpack.c.bf16 %v1780, %v1779
  %v1783 = vlaneseq
  %v1784 = vshrl.u32 %v1783, 7
  %v1785 = vsub.s32 0, %v1784
  %v1786 = vrot.slane %v1516, %v1785
  %v1804 = vunpack.c.l.b16 %v1500
  %v1805 = vunpack.c.l.b16 %v1501
  %v1806 = vunpack.c.l.b16 %v1502
  %v1807 = vunpack.c.l.b16 %v1503
  %v1808 = vunpack.c.l.b16 %v1504
  %v1809 = vunpack.c.l.b16 %v1505
  %v1810 = vunpack.c.l.b16 %v1506
  %v1811 = vunpack.c.l.b16 %v1507
  %v1812 = vunpack.c.l.b16 %v1508
  %v1813 = vunpack.c.l.b16 %v1509
  %v1814 = vunpack.c.l.b16 %v1510
  %v1815 = vunpack.c.l.b16 %v1511
  %v1816 = vunpack.c.l.b16 %v1512
  %v1817 = vunpack.c.l.b16 %v1513
  %v1818 = vunpack.c.l.b16 %v1514
  %v1819 = vunpack.c.l.b16 %v1515
  %v1820 = vpack.c.b16 %v1805, %v1804
  %v1821 = vpack.c.b16 %v1807, %v1806
  %v1822 = vpack.c.b16 %v1809, %v1808
  %v1823 = vpack.c.b16 %v1811, %v1810
  %v1824 = vpack.c.b16 %v1813, %v1812
  %v1825 = vpack.c.b16 %v1815, %v1814
  %v1826 = vpack.c.b16 %v1817, %v1816
  %v1827 = vpack.c.b16 %v1819, %v1818
  %1836 = vmatprep.subr.bf16.mxu0 0
  %1837 = vmatpush1.bf16.msra.mxu0 %v1820
  %1838 = vmatprep.subr.bf16.mxu0 0
  %1839 = vmatpush1.bf16.msra.mxu0 %v1821
  %1840 = vmatprep.subr.bf16.mxu0 0
  %1841 = vmatpush1.bf16.msra.mxu0 %v1822
  %1842 = vmatprep.subr.bf16.mxu0 0
  %1843 = vmatpush1.bf16.msra.mxu0 %v1823
  %1844 = vmatprep.subr.bf16.mxu0 0
  %1845 = vmatpush1.bf16.msra.mxu0 %v1824
  %1846 = vmatprep.subr.bf16.mxu0 0
  %1847 = vmatpush1.bf16.msra.mxu0 %v1825
  %1848 = vmatprep.subr.bf16.mxu0 0
  %1849 = vmatpush1.bf16.msra.mxu0 %v1826
  %1850 = vmatprep.subr.bf16.mxu0 0
  %1851 = vmatpush1.bf16.msra.mxu0 %v1827
  %1852 = vmatprep.subr.bf16.mxu0 0
  %1853 = vmatpush1.bf16.msra.mxu0 0
  %1854 = vmatprep.subr.bf16.mxu0 0
  %1855 = vmatpush1.bf16.msra.mxu0 0
  %1856 = vmatprep.subr.bf16.mxu0 0
  %1857 = vmatpush1.bf16.msra.mxu0 0
  %1858 = vmatprep.subr.bf16.mxu0 0
  %1859 = vmatpush1.bf16.msra.mxu0 0
  %1860 = vmatprep.subr.bf16.mxu0 0
  %1861 = vmatpush1.bf16.msra.mxu0 0
  %1862 = vmatprep.subr.bf16.mxu0 0
  %1863 = vmatpush1.bf16.msra.mxu0 0
  %1864 = vmatprep.subr.bf16.mxu0 0
  %1865 = vmatpush1.bf16.msra.mxu0 0
  %1866 = vmatprep.subr.bf16.mxu0 0
  %1867 = vmatpush1.bf16.msra.mxu0 0
  %1868 = vmatprep.mubr.bf16.mxu0 0
  %1869 = vmatmul.mubr.bf16.gmra.mrb[0].mxu0 %v1781
  %v1870 = vpop.f32.mrb[0].mxu0
  %v1871 = vadd.f32 %v1786, %v1870
  %v1872 = vpop.f32.mrb[0].mxu0
  %v1873 = vpop.f32.mrb[0].mxu0
  %v1874 = vadd.f32 %v1786, %v1873
  %v1875 = vpop.f32.mrb[0].mxu0
  %1876 = vdwg.mxu0
  %1877 = vst [vmem:[%s15] sm:$0xff] %v1871
  %1878 = vst [vmem:[%s15 + $0x8] sm:$0xff] %v1874
  // Predicated region
  $region62: #{rnn_model_forward.1} parent=0 // pred_check
    _
  $region63: #{rnn_model_forward.1} parent=0 // pred_check_branch
    %1880 = sbr.rel (0) target = $region65
  $region64: #{rnn_model_forward.1} parent=0 // pred_region
    _
  $region65: #{rnn_model_forward.1} parent=0 // pred_fallthru
    _
  // Predicated region
  $region66: #{rnn_model_forward.1} parent=0 // pred_check
    _
  $region67: #{rnn_model_forward.1} parent=0 // pred_check_branch
    %1882 = sbr.rel (0) target = $region69
  $region68: #{rnn_model_forward.1} parent=0 // pred_region
    _
  $region69: #{rnn_model_forward.1} parent=0 // pred_fallthru
    _

</llo_original>
